<compile_context>
chip_gen: v6e
topology: v6e:2x2x1
jax: 0.10.0
libtpu: 0.0.40
codegen_flags: <defaults>
</compile_context>

<pallas_src>
import jax
import jax.numpy as jnp
from jax.experimental import pallas as pl
from jax.experimental.pallas import tpu as pltpu

# ---------------- model dimensions ----------------
H_IN, W_IN = 17, 5            # (17-4)*(5-4) * 10 channels = 130 -> fc1 in-features
KH, KW = 5, 5
C_OUT = 10
H_OUT, W_OUT = H_IN - KH + 1, W_IN - KW + 1   # 13, 1
P = H_OUT * W_OUT                              # 13 output positions
KTAPS = KH * KW                                # 25
IN_FLAT = H_IN * W_IN                          # 85 input pixels per sample
FLAT = C_OUT * P                               # 130
D1, D2, D3, D4 = 100, 70, 40, 2
BN_EPS = 1e-5
MAX_B_TILE = 2048                              # batch tile cap (fits v5e 16 MiB scoped VMEM)
VMEM_LIMIT_BYTES = 32 * 1024 * 1024            # explicit, safe on v5e/v6e/v7x


def cnn_kernel(x_ref, wc_ref, bc_ref, w1_ref, b1_ref, w2_ref, b2_ref,
               w3_ref, b3_ref, w4_ref, b4_ref, out_ref):
    def mm(h, w_ref, b_ref):
        # Cast LHS to the weight dtype (no-op for f32 path; bf16 MXU path when
        # weights are streamed as bf16).  Accumulate in f32 on the MXU.
        return jnp.dot(h.astype(w_ref.dtype), w_ref[...],
                       preferred_element_type=jnp.float32) + b_ref[...]

    # conv + conv-bias + BatchNorm (eval) folded into one matmul, then ReLU.
    h = jnp.maximum(mm(x_ref[...], wc_ref, bc_ref), 0.0)        # (B, 130)

    # fc1..fc3 + ReLU  (single (B,K)@(K,N) matmuls, batch on the MXU M dim)
    h = jnp.maximum(mm(h, w1_ref, b1_ref), 0.0)                 # (B, 100)
    h = jnp.maximum(mm(h, w2_ref, b2_ref), 0.0)                 # (B, 70)
    h = jnp.maximum(mm(h, w3_ref, b3_ref), 0.0)                 # (B, 40)

    # fc4 + softmax(dim=1) written in the exact 2-class sigmoid form.
    logits = mm(h, w4_ref, b4_ref)                              # (B, 2), f32
    d = logits[:, 1:2] - logits[:, 0:1]                         # l1 - l0
    p1 = 1.0 / (1.0 + jnp.exp(-d))                              # softmax()[:, 1]
    p0 = 1.0 / (1.0 + jnp.exp(d))                               # softmax()[:, 0]
    out_ref[...] = jnp.concatenate([p0, p1], axis=-1)


def fold_conv_bn(conv_w, conv_b, bn_scale, bn_shift):
    """Fold Conv2d(1->10, 5x5, valid) + bias + eval-mode BN into (Wc, bc) such that
    (x_flat @ Wc + bc)[n, c*13 + p] == BN(conv(x) + b)[n, c, p, 0]."""
    scaled = conv_w[:, 0] * bn_scale[:, None, None]           # (10, 5, 5)
    taps = scaled.reshape(C_OUT, KTAPS).T                     # (25, 10); row t = di*5+dj
    wc = jnp.zeros((IN_FLAT, FLAT), jnp.float32)
    # W_OUT == 1: output position p reads contiguous flat-input rows [5p, 5p+25),
    # and writes columns c*13 + p  (slice p::13).
    for p in range(P):
        wc = wc.at[p * W_IN:p * W_IN + KTAPS, p::P].set(taps)
    bc = conv_b * bn_scale + bn_shift                         # (10,)
    bc = jnp.repeat(bc, P)[None, :]                           # (1, 130), channel-major
    return wc, bc


def _pick_b_tile(n):
    """Batch tile: round up to a multiple of 128 (MXU M dim), cap at MAX_B_TILE.
    Batches > MAX_B_TILE automatically give >= 2 grid steps, which keeps both
    v7x TensorCores busy under the 'parallel' batch axis."""
    n128 = max(128, ((n + 127) // 128) * 128)
    return int(min(n128, MAX_B_TILE))


def cnnnet_forward(x, params, use_bf16=False):
    n = x.shape[0]
    b_tile = _pick_b_tile(n)
    stream_dtype = jnp.bfloat16 if use_bf16 else jnp.float32

    x_flat = x.reshape(n, IN_FLAT).astype(stream_dtype)       # (N, 85)
    n_pad = pl.cdiv(n, b_tile) * b_tile
    if n_pad != n:                                            # pad batch to tile multiple
        x_flat = jnp.pad(x_flat, ((0, n_pad - n), (0, 0)))
    grid = (n_pad // b_tile,)

    def cast_w(w):
        return w.astype(stream_dtype)

    def rep(shape):  # weight block: whole array, same block every grid step
        return pl.BlockSpec(shape, lambda i: (0,) * len(shape))

    out = pl.pallas_call(
        cnn_kernel,
        out_shape=jax.ShapeDtypeStruct((n_pad, D4), jnp.float32),
        grid=grid,
        in_specs=[
            pl.BlockSpec((b_tile, IN_FLAT), lambda i: (i, 0)),   # x batch tile
            rep((IN_FLAT, FLAT)), rep((1, FLAT)),                # folded conv+BN
            rep((FLAT, D1)), rep((1, D1)),
            rep((D1, D2)), rep((1, D2)),
            rep((D2, D3)), rep((1, D3)),
            rep((D3, D4)), rep((1, D4)),
        ],
        out_specs=pl.BlockSpec((b_tile, D4), lambda i: (i, 0)),
        compiler_params=pltpu.CompilerParams(
            dimension_semantics=("parallel",),
            vmem_limit_bytes=VMEM_LIMIT_BYTES),
    )(x_flat, cast_w(params["wc"]), params["bc"],
      cast_w(params["w1"]), params["b1"], cast_w(params["w2"]), params["b2"],
      cast_w(params["w3"]), params["b3"], cast_w(params["w4"]), params["b4"])
    return out[:n]


def make_params(key):
    ks = jax.random.split(key, 14)
    f32 = jnp.float32
    conv_w = jax.random.normal(ks[0], (C_OUT, 1, KH, KW), f32) * 0.1
    conv_b = jax.random.normal(ks[1], (C_OUT,), f32) * 0.1
    gamma = 1.0 + 0.1 * jax.random.normal(ks[2], (C_OUT,), f32)
    beta = 0.1 * jax.random.normal(ks[3], (C_OUT,), f32)
    run_mean = 0.1 * jax.random.normal(ks[4], (C_OUT,), f32)
    run_var = jnp.abs(jax.random.normal(ks[5], (C_OUT,), f32)) + 0.5
    # TODO(synk): PyTorch BatchNorm2d in train() mode uses batch statistics; we
    # implement eval-mode BN with fixed running stats (precomputed scale/shift).
    bn_scale = gamma / jnp.sqrt(run_var + BN_EPS)
    bn_shift = beta - run_mean * bn_scale

    def linear(kw, kb, fan_in, fan_out):
        w = jax.random.normal(kw, (fan_in, fan_out), f32) * (1.0 / jnp.sqrt(fan_in))
        b = jax.random.normal(kb, (1, fan_out), f32) * 0.1
        return w, b

    w1, b1 = linear(ks[6], ks[7], FLAT, D1)
    w2, b2 = linear(ks[8], ks[9], D1, D2)
    w3, b3 = linear(ks[10], ks[11], D2, D3)
    w4, b4 = linear(ks[12], ks[13], D3, D4)

    wc, bc = fold_conv_bn(conv_w, conv_b, bn_scale, bn_shift)

    return {
        # kernel params (folded conv+BN)
        "wc": wc, "bc": bc,
        "w1": w1, "b1": b1, "w2": w2, "b2": b2,
        "w3": w3, "b3": b3, "w4": w4, "b4": b4,
        # raw params kept for the pure-JAX reference
        "conv_w": conv_w, "conv_b": conv_b,
        "bn_scale": bn_scale, "bn_shift": bn_shift,
    }


def reference_forward(x, params):
    """Pure-JAX reference with the original (unfolded) module semantics."""
    n = x.shape[0]
    cols = []
    for di in range(KH):
        for dj in range(KW):
            cols.append(x[:, 0, di:di + H_OUT, dj:dj + W_OUT].reshape(n, P))
    patches = jnp.stack(cols, axis=1).astype(jnp.float32)       # (N, 25, 13)
    cw = params["conv_w"].reshape(C_OUT, KTAPS)                  # (10, 25)
    h = jnp.einsum("ok,nkp->nop", cw, patches)                   # (N, 10, 13)
    h = h + params["conv_b"][None, :, None]
    h = h * params["bn_scale"][None, :, None] + params["bn_shift"][None, :, None]
    h = jnp.maximum(h, 0.0)
    flat = h.reshape(n, FLAT)                                    # channel-major == x.view(N,-1)
    y = jnp.maximum(flat @ params["w1"] + params["b1"], 0.0)
    y = jnp.maximum(y @ params["w2"] + params["b2"], 0.0)
    y = jnp.maximum(y @ params["w3"] + params["b3"], 0.0)
    logits = y @ params["w4"] + params["b4"]
    return jax.nn.softmax(logits, axis=1)


if __name__ == "__main__":
    key = jax.random.PRNGKey(0)
    kx, kp = jax.random.split(key)
    params = make_params(kp)

    # Small shape consistent with the module: NCHW = (2, 1, 17, 5).
    N = 2
    x = jax.random.normal(kx, (N, 1, H_IN, W_IN), jnp.float32)
    out = jax.block_until_ready(cnnnet_forward(x, params))
    ref = jax.block_until_ready(reference_forward(x, params))
    assert out.shape == (N, D4), out.shape
    assert jnp.allclose(out, ref, atol=1e-4, rtol=1e-4), (out, ref)

    # Padded-tile path (N not a multiple of 128).
    N2 = 300
    x2 = jax.random.normal(jax.random.PRNGKey(1), (N2, 1, H_IN, W_IN), jnp.float32)
    out2 = jax.block_until_ready(cnnnet_forward(x2, params))
    ref2 = jax.block_until_ready(reference_forward(x2, params))
    assert out2.shape == (N2, D4), out2.shape
    assert jnp.allclose(out2, ref2, atol=1e-4, rtol=1e-4)

    # Large-batch path: multiple grid steps at the full B_TILE (2048) plus padding.
    N3 = 4500
    x3 = jax.random.normal(jax.random.PRNGKey(2), (N3, 1, H_IN, W_IN), jnp.float32)
    out3 = jax.block_until_ready(cnnnet_forward(x3, params))
    ref3 = jax.block_until_ready(reference_forward(x3, params))
    assert out3.shape == (N3, D4), out3.shape
    assert jnp.allclose(out3, ref3, atol=1e-4, rtol=1e-4)

    # Optional bf16 streaming path (v6e/v7x HBM-BW win): check it compiles and
    # produces valid probabilities; numerics deliberately not held to 1e-4.
    out_bf16 = jax.block_until_ready(cnnnet_forward(x3, params, use_bf16=True))
    assert out_bf16.shape == (N3, D4)
    assert bool(jnp.all(jnp.isfinite(out_bf16)))
    assert bool(jnp.allclose(jnp.sum(out_bf16, axis=1), 1.0, atol=1e-3))

    print("KERNEL_OK")
</pallas_src>

<mosaic_0001>
module attributes {stable_mosaic.version = 11 : i64} {
  func.func @cnn_kernel(%arg0: i32, %arg1: memref<128x85xf32, #tpu.memory_space<vmem>>, %arg2: memref<85x130xf32, #tpu.memory_space<vmem>>, %arg3: memref<1x130xf32, #tpu.memory_space<vmem>>, %arg4: memref<130x100xf32, #tpu.memory_space<vmem>>, %arg5: memref<1x100xf32, #tpu.memory_space<vmem>>, %arg6: memref<100x70xf32, #tpu.memory_space<vmem>>, %arg7: memref<1x70xf32, #tpu.memory_space<vmem>>, %arg8: memref<70x40xf32, #tpu.memory_space<vmem>>, %arg9: memref<1x40xf32, #tpu.memory_space<vmem>>, %arg10: memref<40x2xf32, #tpu.memory_space<vmem>>, %arg11: memref<1x2xf32, #tpu.memory_space<vmem>>, %arg12: memref<128x2xf32, #tpu.memory_space<vmem>>) attributes {dimension_semantics = [#tpu.dimension_semantics<parallel>], iteration_bounds = array<i64: 1>, scalar_prefetch = 0 : i64, scratch_operands = 0 : i64, tpu.core_type = #tpu.core_type<tc>, window_params = [{transform_indices = @transform_0, window_bounds = array<i64: 128, 85>}, {pipeline_mode = #tpu.pipeline_mode<synchronous>, transform_indices = @transform_1, window_bounds = array<i64: 85, 130>}, {pipeline_mode = #tpu.pipeline_mode<synchronous>, transform_indices = @transform_2, window_bounds = array<i64: 1, 130>}, {pipeline_mode = #tpu.pipeline_mode<synchronous>, transform_indices = @transform_3, window_bounds = array<i64: 130, 100>}, {pipeline_mode = #tpu.pipeline_mode<synchronous>, transform_indices = @transform_4, window_bounds = array<i64: 1, 100>}, {pipeline_mode = #tpu.pipeline_mode<synchronous>, transform_indices = @transform_5, window_bounds = array<i64: 100, 70>}, {pipeline_mode = #tpu.pipeline_mode<synchronous>, transform_indices = @transform_6, window_bounds = array<i64: 1, 70>}, {pipeline_mode = #tpu.pipeline_mode<synchronous>, transform_indices = @transform_7, window_bounds = array<i64: 70, 40>}, {pipeline_mode = #tpu.pipeline_mode<synchronous>, transform_indices = @transform_8, window_bounds = array<i64: 1, 40>}, {pipeline_mode = #tpu.pipeline_mode<synchronous>, transform_indices = @transform_9, window_bounds = array<i64: 40, 2>}, {pipeline_mode = #tpu.pipeline_mode<synchronous>, transform_indices = @transform_10, window_bounds = array<i64: 1, 2>}, {transform_indices = @transform_11, window_bounds = array<i64: 128, 2>}]} {
    %c0 = arith.constant 0 : index
    %c0_0 = arith.constant 0 : index
    %0 = vector.load %arg1[%c0, %c0_0] : memref<128x85xf32, #tpu.memory_space<vmem>>, vector<128x85xf32>
    %c0_1 = arith.constant 0 : index
    %c0_2 = arith.constant 0 : index
    %1 = vector.load %arg2[%c0_1, %c0_2] : memref<85x130xf32, #tpu.memory_space<vmem>>, vector<85x130xf32>
    %cst = arith.constant dense<0.000000e+00> : vector<128x130xf32>
    %2 = tpu.matmul %0, %1, %cst {dimension_numbers = #tpu.dot_dimension_numbers<[1], [0], [0], [1], [0, 0, 1, 1], [], []>} : vector<128x85xf32>, vector<85x130xf32>, vector<128x130xf32> -> vector<128x130xf32>
    %c0_3 = arith.constant 0 : index
    %c0_4 = arith.constant 0 : index
    %3 = vector.load %arg3[%c0_3, %c0_4] : memref<1x130xf32, #tpu.memory_space<vmem>>, vector<1x130xf32>
    %4 = vector.broadcast %3 : vector<1x130xf32> to vector<128x130xf32>
    %5 = arith.addf %2, %4 : vector<128x130xf32>
    %cst_5 = arith.constant 0.000000e+00 : f32
    %6 = vector.broadcast %cst_5 : f32 to vector<128x130xf32>
    %7 = arith.maximumf %5, %6 : vector<128x130xf32>
    %c0_6 = arith.constant 0 : index
    %c0_7 = arith.constant 0 : index
    %8 = vector.load %arg4[%c0_6, %c0_7] : memref<130x100xf32, #tpu.memory_space<vmem>>, vector<130x100xf32>
    %cst_8 = arith.constant dense<0.000000e+00> : vector<128x100xf32>
    %9 = tpu.matmul %7, %8, %cst_8 {dimension_numbers = #tpu.dot_dimension_numbers<[1], [0], [0], [1], [0, 0, 1, 1], [], []>} : vector<128x130xf32>, vector<130x100xf32>, vector<128x100xf32> -> vector<128x100xf32>
    %c0_9 = arith.constant 0 : index
    %c0_10 = arith.constant 0 : index
    %10 = vector.load %arg5[%c0_9, %c0_10] : memref<1x100xf32, #tpu.memory_space<vmem>>, vector<1x100xf32>
    %11 = vector.broadcast %10 : vector<1x100xf32> to vector<128x100xf32>
    %12 = arith.addf %9, %11 : vector<128x100xf32>
    %cst_11 = arith.constant 0.000000e+00 : f32
    %13 = vector.broadcast %cst_11 : f32 to vector<128x100xf32>
    %14 = arith.maximumf %12, %13 : vector<128x100xf32>
    %c0_12 = arith.constant 0 : index
    %c0_13 = arith.constant 0 : index
    %15 = vector.load %arg6[%c0_12, %c0_13] : memref<100x70xf32, #tpu.memory_space<vmem>>, vector<100x70xf32>
    %cst_14 = arith.constant dense<0.000000e+00> : vector<128x70xf32>
    %16 = tpu.matmul %14, %15, %cst_14 {dimension_numbers = #tpu.dot_dimension_numbers<[1], [0], [0], [1], [0, 0, 1, 1], [], []>} : vector<128x100xf32>, vector<100x70xf32>, vector<128x70xf32> -> vector<128x70xf32>
    %c0_15 = arith.constant 0 : index
    %c0_16 = arith.constant 0 : index
    %17 = vector.load %arg7[%c0_15, %c0_16] : memref<1x70xf32, #tpu.memory_space<vmem>>, vector<1x70xf32>
    %18 = vector.broadcast %17 : vector<1x70xf32> to vector<128x70xf32>
    %19 = arith.addf %16, %18 : vector<128x70xf32>
    %cst_17 = arith.constant 0.000000e+00 : f32
    %20 = vector.broadcast %cst_17 : f32 to vector<128x70xf32>
    %21 = arith.maximumf %19, %20 : vector<128x70xf32>
    %c0_18 = arith.constant 0 : index
    %c0_19 = arith.constant 0 : index
    %22 = vector.load %arg8[%c0_18, %c0_19] : memref<70x40xf32, #tpu.memory_space<vmem>>, vector<70x40xf32>
    %cst_20 = arith.constant dense<0.000000e+00> : vector<128x40xf32>
    %23 = tpu.matmul %21, %22, %cst_20 {dimension_numbers = #tpu.dot_dimension_numbers<[1], [0], [0], [1], [0, 0, 1, 1], [], []>} : vector<128x70xf32>, vector<70x40xf32>, vector<128x40xf32> -> vector<128x40xf32>
    %c0_21 = arith.constant 0 : index
    %c0_22 = arith.constant 0 : index
    %24 = vector.load %arg9[%c0_21, %c0_22] : memref<1x40xf32, #tpu.memory_space<vmem>>, vector<1x40xf32>
    %25 = vector.broadcast %24 : vector<1x40xf32> to vector<128x40xf32>
    %26 = arith.addf %23, %25 : vector<128x40xf32>
    %cst_23 = arith.constant 0.000000e+00 : f32
    %27 = vector.broadcast %cst_23 : f32 to vector<128x40xf32>
    %28 = arith.maximumf %26, %27 : vector<128x40xf32>
    %c0_24 = arith.constant 0 : index
    %c0_25 = arith.constant 0 : index
    %29 = vector.load %arg10[%c0_24, %c0_25] : memref<40x2xf32, #tpu.memory_space<vmem>>, vector<40x2xf32>
    %cst_26 = arith.constant dense<0.000000e+00> : vector<128x2xf32>
    %30 = tpu.matmul %28, %29, %cst_26 {dimension_numbers = #tpu.dot_dimension_numbers<[1], [0], [0], [1], [0, 0, 1, 1], [], []>} : vector<128x40xf32>, vector<40x2xf32>, vector<128x2xf32> -> vector<128x2xf32>
    %c0_27 = arith.constant 0 : index
    %c0_28 = arith.constant 0 : index
    %31 = vector.load %arg11[%c0_27, %c0_28] : memref<1x2xf32, #tpu.memory_space<vmem>>, vector<1x2xf32>
    %32 = vector.broadcast %31 : vector<1x2xf32> to vector<128x2xf32>
    %33 = arith.addf %30, %32 : vector<128x2xf32>
    %34 = vector.extract_strided_slice %33 {offsets = [0, 1], sizes = [128, 1], strides = [1, 1]} : vector<128x2xf32> to vector<128x1xf32>
    %35 = vector.extract_strided_slice %33 {offsets = [0, 0], sizes = [128, 1], strides = [1, 1]} : vector<128x2xf32> to vector<128x1xf32>
    %36 = arith.subf %34, %35 : vector<128x1xf32>
    %cst_29 = arith.constant 0.000000e+00 : f32
    %37 = vector.broadcast %cst_29 : f32 to vector<128x1xf32>
    %38 = arith.subf %37, %36 : vector<128x1xf32>
    %39 = math.exp %38 : vector<128x1xf32>
    %cst_30 = arith.constant 1.000000e+00 : f32
    %40 = vector.broadcast %cst_30 : f32 to vector<128x1xf32>
    %41 = arith.addf %40, %39 : vector<128x1xf32>
    %cst_31 = arith.constant 1.000000e+00 : f32
    %42 = vector.broadcast %cst_31 : f32 to vector<128x1xf32>
    %43 = arith.divf %42, %41 : vector<128x1xf32>
    %44 = math.exp %36 : vector<128x1xf32>
    %cst_32 = arith.constant 1.000000e+00 : f32
    %45 = vector.broadcast %cst_32 : f32 to vector<128x1xf32>
    %46 = arith.addf %45, %44 : vector<128x1xf32>
    %cst_33 = arith.constant 1.000000e+00 : f32
    %47 = vector.broadcast %cst_33 : f32 to vector<128x1xf32>
    %48 = arith.divf %47, %46 : vector<128x1xf32>
    %49 = tpu.concatenate %48, %43 in 1 : vector<128x1xf32>, vector<128x1xf32> -> vector<128x2xf32>
    %c0_34 = arith.constant 0 : index
    %c0_35 = arith.constant 0 : index
    %50 = vector.load %arg12[%c0_34, %c0_35] : memref<128x2xf32, #tpu.memory_space<vmem>>, vector<128x2xf32>
    tpu.vector_store %arg12[%c0_34, %c0_35], %49 {strides = array<i32>} : memref<128x2xf32, #tpu.memory_space<vmem>>, vector<128x2xf32>,
    return
  }
  func.func @transform_0(%arg0: i32) -> (i32, i32) {
    %c0_i32 = arith.constant 0 : i32
    %c0_i32_0 = arith.constant 0 : i32
    return %arg0, %c0_i32 : i32, i32
  }
  func.func @transform_1(%arg0: i32) -> (i32, i32) {
    %c0_i32 = arith.constant 0 : i32
    %c0_i32_0 = arith.constant 0 : i32
    %c0_i32_1 = arith.constant 0 : i32
    return %c0_i32, %c0_i32_0 : i32, i32
  }
  func.func @transform_2(%arg0: i32) -> (i32, i32) {
    %c0_i32 = arith.constant 0 : i32
    %c0_i32_0 = arith.constant 0 : i32
    %c0_i32_1 = arith.constant 0 : i32
    return %c0_i32, %c0_i32_0 : i32, i32
  }
  func.func @transform_3(%arg0: i32) -> (i32, i32) {
    %c0_i32 = arith.constant 0 : i32
    %c0_i32_0 = arith.constant 0 : i32
    %c0_i32_1 = arith.constant 0 : i32
    return %c0_i32, %c0_i32_0 : i32, i32
  }
  func.func @transform_4(%arg0: i32) -> (i32, i32) {
    %c0_i32 = arith.constant 0 : i32
    %c0_i32_0 = arith.constant 0 : i32
    %c0_i32_1 = arith.constant 0 : i32
    return %c0_i32, %c0_i32_0 : i32, i32
  }
  func.func @transform_5(%arg0: i32) -> (i32, i32) {
    %c0_i32 = arith.constant 0 : i32
    %c0_i32_0 = arith.constant 0 : i32
    %c0_i32_1 = arith.constant 0 : i32
    return %c0_i32, %c0_i32_0 : i32, i32
  }
  func.func @transform_6(%arg0: i32) -> (i32, i32) {
    %c0_i32 = arith.constant 0 : i32
    %c0_i32_0 = arith.constant 0 : i32
    %c0_i32_1 = arith.constant 0 : i32
    return %c0_i32, %c0_i32_0 : i32, i32
  }
  func.func @transform_7(%arg0: i32) -> (i32, i32) {
    %c0_i32 = arith.constant 0 : i32
    %c0_i32_0 = arith.constant 0 : i32
    %c0_i32_1 = arith.constant 0 : i32
    return %c0_i32, %c0_i32_0 : i32, i32
  }
  func.func @transform_8(%arg0: i32) -> (i32, i32) {
    %c0_i32 = arith.constant 0 : i32
    %c0_i32_0 = arith.constant 0 : i32
    %c0_i32_1 = arith.constant 0 : i32
    return %c0_i32, %c0_i32_0 : i32, i32
  }
  func.func @transform_9(%arg0: i32) -> (i32, i32) {
    %c0_i32 = arith.constant 0 : i32
    %c0_i32_0 = arith.constant 0 : i32
    %c0_i32_1 = arith.constant 0 : i32
    return %c0_i32, %c0_i32_0 : i32, i32
  }
  func.func @transform_10(%arg0: i32) -> (i32, i32) {
    %c0_i32 = arith.constant 0 : i32
    %c0_i32_0 = arith.constant 0 : i32
    %c0_i32_1 = arith.constant 0 : i32
    return %c0_i32, %c0_i32_0 : i32, i32
  }
  func.func @transform_11(%arg0: i32) -> (i32, i32) {
    %c0_i32 = arith.constant 0 : i32
    %c0_i32_0 = arith.constant 0 : i32
    return %arg0, %c0_i32 : i32, i32
  }
}

</mosaic_0001>

<llo_original>
// kernel: tpu_custom_call.1
$region0: #{tpu_custom_call.1}
  #allocation0 [shape = 'u32[]', space=smem, size = 0x4, offset = 0x4, fixed_abs, tag = 'smem constant byte address 0x4 - core index']
  #allocation1 [shape = 'u32[144,128]{1,0:T(1,128)}', space=vmem, size = 0x12000, scoped, tag = 'internal scratch']
  %s0 = inlined_call_operand.vmem [shape: f32[128,85], index: 0, kind: input, shape index: {}]
  %s1 = inlined_call_operand.vmem [shape: f32[85,130], index: 1, kind: input, shape index: {}]
  %s2 = inlined_call_operand.vmem [shape: f32[1,130], index: 2, kind: input, shape index: {}]
  %s3 = inlined_call_operand.vmem [shape: f32[130,100], index: 3, kind: input, shape index: {}]
  %s4 = inlined_call_operand.vmem [shape: f32[1,100], index: 4, kind: input, shape index: {}]
  %s5 = inlined_call_operand.vmem [shape: f32[100,70], index: 5, kind: input, shape index: {}]
  %s6 = inlined_call_operand.vmem [shape: f32[1,70], index: 6, kind: input, shape index: {}]
  %s7 = inlined_call_operand.vmem [shape: f32[70,40], index: 7, kind: input, shape index: {}]
  %s8 = inlined_call_operand.vmem [shape: f32[1,40], index: 8, kind: input, shape index: {}]
  %s9 = inlined_call_operand.vmem [shape: f32[40,2], index: 9, kind: input, shape index: {}]
  %s10 = inlined_call_operand.vmem [shape: f32[1,2], index: 10, kind: input, shape index: {}]
  %s11 = inlined_call_operand.vmem [shape: f32[128,2], index: 11, kind: output, shape index: {}]
  %s12 = sld [smem:[#allocation0]]
  $region54: #{tpu_custom_call.1} parent=0
    _
  %s14 = ssub.s32 1, %s12
  %s15 = scalar_select 0, %s14, %s12
  // Predicated region
  $region2: #{tpu_custom_call.1} parent=0 // pred_check
    _
  $region3: #{tpu_custom_call.1} parent=0 // pred_check_branch
    %17 = sbr.rel (0) target = $region5
  $region4: #{tpu_custom_call.1} parent=0 // pred_region
    _
  $region5: #{tpu_custom_call.1} parent=0 // pred_fallthru
    _
  // Predicated region
  $region6: #{tpu_custom_call.1} parent=0 // pred_check
    _
  $region7: #{tpu_custom_call.1} parent=0 // pred_check_branch
    %19 = sbr.rel (0) target = $region9
  $region8: #{tpu_custom_call.1} parent=0 // pred_region
    _
  $region9: #{tpu_custom_call.1} parent=0 // pred_fallthru
    _
  // Predicated region
  $region10: #{tpu_custom_call.1} parent=0 // pred_check
    _
  $region11: #{tpu_custom_call.1} parent=0 // pred_check_branch
    %21 = sbr.rel (0) target = $region13
  $region12: #{tpu_custom_call.1} parent=0 // pred_region
    _
  $region13: #{tpu_custom_call.1} parent=0 // pred_fallthru
    _
  // Predicated region
  $region14: #{tpu_custom_call.1} parent=0 // pred_check
    _
  $region15: #{tpu_custom_call.1} parent=0 // pred_check_branch
    %23 = sbr.rel (0) target = $region17
  $region16: #{tpu_custom_call.1} parent=0 // pred_region
    _
  $region17: #{tpu_custom_call.1} parent=0 // pred_fallthru
    _
  // Predicated region
  $region18: #{tpu_custom_call.1} parent=0 // pred_check
    _
  $region19: #{tpu_custom_call.1} parent=0 // pred_check_branch
    %25 = sbr.rel (0) target = $region21
  $region20: #{tpu_custom_call.1} parent=0 // pred_region
    _
  $region21: #{tpu_custom_call.1} parent=0 // pred_fallthru
    _
  // Predicated region
  $region22: #{tpu_custom_call.1} parent=0 // pred_check
    _
  $region23: #{tpu_custom_call.1} parent=0 // pred_check_branch
    %27 = sbr.rel (0) target = $region25
  $region24: #{tpu_custom_call.1} parent=0 // pred_region
    _
  $region25: #{tpu_custom_call.1} parent=0 // pred_fallthru
    _
  // Predicated region
  $region26: #{tpu_custom_call.1} parent=0 // pred_check
    _
  $region27: #{tpu_custom_call.1} parent=0 // pred_check_branch
    %29 = sbr.rel (0) target = $region29
  $region28: #{tpu_custom_call.1} parent=0 // pred_region
    _
  $region29: #{tpu_custom_call.1} parent=0 // pred_fallthru
    _
  // Predicated region
  $region30: #{tpu_custom_call.1} parent=0 // pred_check
    _
  $region31: #{tpu_custom_call.1} parent=0 // pred_check_branch
    %31 = sbr.rel (0) target = $region33
  $region32: #{tpu_custom_call.1} parent=0 // pred_region
    _
  $region33: #{tpu_custom_call.1} parent=0 // pred_fallthru
    _
  // Predicated region
  $region34: #{tpu_custom_call.1} parent=0 // pred_check
    _
  $region35: #{tpu_custom_call.1} parent=0 // pred_check_branch
    %33 = sbr.rel (0) target = $region37
  $region36: #{tpu_custom_call.1} parent=0 // pred_region
    _
  $region37: #{tpu_custom_call.1} parent=0 // pred_fallthru
    _
  // Predicated region
  $region38: #{tpu_custom_call.1} parent=0 // pred_check
    _
  $region39: #{tpu_custom_call.1} parent=0 // pred_check_branch
    %35 = sbr.rel (0) target = $region41
  $region40: #{tpu_custom_call.1} parent=0 // pred_region
    _
  $region41: #{tpu_custom_call.1} parent=0 // pred_fallthru
    _
  // Predicated region
  $region42: #{tpu_custom_call.1} parent=0 // pred_check
    _
  $region43: #{tpu_custom_call.1} parent=0 // pred_check_branch
    %37 = sbr.rel (0) target = $region45
  $region44: #{tpu_custom_call.1} parent=0 // pred_region
    _
  $region45: #{tpu_custom_call.1} parent=0 // pred_fallthru
    _
  %v38 = vld [vmem:[%s0] sm:$0xff]
  %v39 = vld [vmem:[%s0 + $0x8] sm:$0xff]
  %v40 = vld [vmem:[%s0 + $0x10] sm:$0xff]
  %v41 = vld [vmem:[%s0 + $0x18] sm:$0xff]
  %v42 = vld [vmem:[%s0 + $0x20] sm:$0xff]
  %v43 = vld [vmem:[%s0 + $0x28] sm:$0xff]
  %v44 = vld [vmem:[%s0 + $0x30] sm:$0xff]
  %v45 = vld [vmem:[%s0 + $0x38] sm:$0xff]
  %v46 = vld [vmem:[%s0 + $0x40] sm:$0xff]
  %v47 = vld [vmem:[%s0 + $0x48] sm:$0xff]
  %v48 = vld [vmem:[%s0 + $0x50] sm:$0xff]
  %v49 = vld [vmem:[%s0 + $0x58] sm:$0xff]
  %v50 = vld [vmem:[%s0 + $0x60] sm:$0xff]
  %v51 = vld [vmem:[%s0 + $0x68] sm:$0xff]
  %v52 = vld [vmem:[%s0 + $0x70] sm:$0xff]
  %v53 = vld [vmem:[%s0 + $0x78] sm:$0xff]
  %v54 = vld [vmem:[%s1] sm:$0xff]
  %v55 = vld [vmem:[%s1 + $0x8] sm:$0xff]
  %v56 = vld [vmem:[%s1 + $0x10] sm:$0xff]
  %v57 = vld [vmem:[%s1 + $0x18] sm:$0xff]
  %v58 = vld [vmem:[%s1 + $0x20] sm:$0xff]
  %v59 = vld [vmem:[%s1 + $0x28] sm:$0xff]
  %v60 = vld [vmem:[%s1 + $0x30] sm:$0xff]
  %v61 = vld [vmem:[%s1 + $0x38] sm:$0xff]
  %v62 = vld [vmem:[%s1 + $0x40] sm:$0xff]
  %v63 = vld [vmem:[%s1 + $0x48] sm:$0xff]
  %v64 = vld [vmem:[%s1 + $0x50] sm:$0xff]
  %v65 = vld [vmem:[%s1 + $0x58] sm:$0xff]
  %v66 = vld [vmem:[%s1 + $0x60] sm:$0xff]
  %v67 = vld [vmem:[%s1 + $0x68] sm:$0xff]
  %v68 = vld [vmem:[%s1 + $0x70] sm:$0xff]
  %v69 = vld [vmem:[%s1 + $0x78] sm:$0xff]
  %v70 = vld [vmem:[%s1 + $0x80] sm:$0xff]
  %v71 = vld [vmem:[%s1 + $0x88] sm:$0xff]
  %v72 = vld [vmem:[%s1 + $0x90] sm:$0xff]
  %v73 = vld [vmem:[%s1 + $0x98] sm:$0xff]
  %v74 = vld [vmem:[%s1 + $0xa0] sm:$0x1f]
  %v75 = vld [vmem:[%s1 + $0xa8] sm:$0x1f]
  %v76 = vld [vmem:[%s2] sm:$0x3]
  %v78 = vlaneseq
  %v79 = vshrl.u32 %v78, 7
  %v80 = vsub.s32 0, %v79
  %v81 = vrot.slane %v76, %v80
  %v82 = vlaneseq
  %v83 = vshrl.u32 %v82, 7
  %v84 = vsub.s32 1, %v83
  %v85 = vrot.slane %v76, %v84
  %vm88 = vcmask 695296
  %v90 = vsel %vm88, %v38, 0
  %v93 = vsel %vm88, %v39, 0
  %v96 = vsel %vm88, %v40, 0
  %v99 = vsel %vm88, %v41, 0
  %v102 = vsel %vm88, %v42, 0
  %v105 = vsel %vm88, %v43, 0
  %v108 = vsel %vm88, %v44, 0
  %v111 = vsel %vm88, %v45, 0
  %v114 = vsel %vm88, %v46, 0
  %v117 = vsel %vm88, %v47, 0
  %v120 = vsel %vm88, %v48, 0
  %v123 = vsel %vm88, %v49, 0
  %v126 = vsel %vm88, %v50, 0
  %v129 = vsel %vm88, %v51, 0
  %v132 = vsel %vm88, %v52, 0
  %v135 = vsel %vm88, %v53, 0
  %vm137 = vcmask 1044480
  %v139 = vsel %vm137, %v74, 0
  %v142 = vsel %vm137, %v75, 0
  %144 = vmatprep.subr.mxu0 0.0
  %145 = vmatpush1.msra.mxu0 0.0
  %146 = vmatprep.subr.mxu0 0.0
  %147 = vmatpush1.msra.mxu0 0.0
  %148 = vmatprep.subr.mxu0 0.0
  %149 = vmatpush1.msra.mxu0 0.0
  %150 = vmatprep.subr.mxu0 0.0
  %151 = vmatpush1.msra.mxu0 0.0
  %152 = vmatprep.subr.mxu0 0.0
  %153 = vmatpush1.msra.mxu0 0.0
  %154 = vmatprep.subr.mxu0 %v142
  %155 = vmatpush1.msra.mxu0 %v139
  %156 = vmatprep.subr.mxu0 %v73
  %157 = vmatpush1.msra.mxu0 %v72
  %158 = vmatprep.subr.mxu0 %v71
  %159 = vmatpush1.msra.mxu0 %v70
  %160 = vmatprep.subr.mxu0 %v69
  %161 = vmatpush1.msra.mxu0 %v68
  %162 = vmatprep.subr.mxu0 %v67
  %163 = vmatpush1.msra.mxu0 %v66
  %164 = vmatprep.subr.mxu0 %v65
  %165 = vmatpush1.msra.mxu0 %v64
  %166 = vmatprep.subr.mxu0 %v63
  %167 = vmatpush1.msra.mxu0 %v62
  %168 = vmatprep.subr.mxu0 %v61
  %169 = vmatpush1.msra.mxu0 %v60
  %170 = vmatprep.subr.mxu0 %v59
  %171 = vmatpush1.msra.mxu0 %v58
  %172 = vmatprep.subr.mxu0 %v57
  %173 = vmatpush1.msra.mxu0 %v56
  %174 = vmatprep.subr.mxu0 %v55
  %175 = vmatpush1.msra.mxu0 %v54
  %176 = vmatprep.subr.mxu0 0.0
  %177 = vmatpush2.msra.mxu0 0.0
  %178 = vmatprep.subr.mxu0 0.0
  %179 = vmatpush2.msra.mxu0 0.0
  %180 = vmatprep.subr.mxu0 0.0
  %181 = vmatpush2.msra.mxu0 0.0
  %182 = vmatprep.subr.mxu0 0.0
  %183 = vmatpush2.msra.mxu0 0.0
  %184 = vmatprep.subr.mxu0 0.0
  %185 = vmatpush2.msra.mxu0 0.0
  %186 = vmatprep.subr.mxu0 0.0
  %187 = vmatpush2.msra.mxu0 0.0
  %188 = vmatprep.subr.mxu0 0.0
  %189 = vmatpush2.msra.mxu0 0.0
  %190 = vmatprep.subr.mxu0 0.0
  %191 = vmatpush2.msra.mxu0 0.0
  %192 = vmatprep.subr.mxu0 0.0
  %193 = vmatpush2.msra.mxu0 0.0
  %194 = vmatprep.subr.mxu0 0.0
  %195 = vmatpush2.msra.mxu0 0.0
  %196 = vmatprep.subr.mxu0 0.0
  %197 = vmatpush2.msra.mxu0 0.0
  %198 = vmatprep.subr.mxu0 0.0
  %199 = vmatpush2.msra.mxu0 0.0
  %200 = vmatprep.subr.mxu0 0.0
  %201 = vmatpush2.msra.mxu0 0.0
  %202 = vmatprep.subr.mxu0 0.0
  %203 = vmatpush2.msra.mxu0 0.0
  %204 = vmatprep.subr.mxu0 0.0
  %205 = vmatpush2.msra.mxu0 0.0
  %206 = vmatprep.subr.mxu0 0.0
  %207 = vmatpush2.msra.mxu0 0.0
  %208 = vmatprep.mubr.f32.mxu0 0.0
  %209 = vmatmul.mubr.f32.gmra.mxu0 %v90
  %v210 = vpop.f32.mrf.mxu0
  %v211 = vadd.f32 %v81, %v210
  %v212 = vpop.f32.mrf.mxu0
  %v213 = vadd.f32 %v85, %v212
  %214 = vmatprep.mubr.f32.mxu0 0.0
  %215 = vmatmul.mubr.f32.gmra.mxu0 %v93
  %v216 = vpop.f32.mrf.mxu0
  %v217 = vadd.f32 %v81, %v216
  %v218 = vpop.f32.mrf.mxu0
  %v219 = vadd.f32 %v85, %v218
  %220 = vmatprep.mubr.f32.mxu0 0.0
  %221 = vmatmul.mubr.f32.gmra.mxu0 %v96
  %v222 = vpop.f32.mrf.mxu0
  %v223 = vadd.f32 %v81, %v222
  %v224 = vpop.f32.mrf.mxu0
  %v225 = vadd.f32 %v85, %v224
  %226 = vmatprep.mubr.f32.mxu0 0.0
  %227 = vmatmul.mubr.f32.gmra.mxu0 %v99
  %v228 = vpop.f32.mrf.mxu0
  %v229 = vadd.f32 %v81, %v228
  %v230 = vpop.f32.mrf.mxu0
  %v231 = vadd.f32 %v85, %v230
  %232 = vmatprep.mubr.f32.mxu0 0.0
  %233 = vmatmul.mubr.f32.gmra.mxu0 %v102
  %v234 = vpop.f32.mrf.mxu0
  %v235 = vadd.f32 %v81, %v234
  %v236 = vpop.f32.mrf.mxu0
  %v237 = vadd.f32 %v85, %v236
  %238 = vmatprep.mubr.f32.mxu0 0.0
  %239 = vmatmul.mubr.f32.gmra.mxu0 %v105
  %v240 = vpop.f32.mrf.mxu0
  %v241 = vadd.f32 %v81, %v240
  %v242 = vpop.f32.mrf.mxu0
  %v243 = vadd.f32 %v85, %v242
  %244 = vmatprep.mubr.f32.mxu0 0.0
  %245 = vmatmul.mubr.f32.gmra.mxu0 %v108
  %v246 = vpop.f32.mrf.mxu0
  %v247 = vadd.f32 %v81, %v246
  %v248 = vpop.f32.mrf.mxu0
  %v249 = vadd.f32 %v85, %v248
  %250 = vmatprep.mubr.f32.mxu0 0.0
  %251 = vmatmul.mubr.f32.gmra.mxu0 %v111
  %v252 = vpop.f32.mrf.mxu0
  %v253 = vadd.f32 %v81, %v252
  %v254 = vpop.f32.mrf.mxu0
  %v255 = vadd.f32 %v85, %v254
  %256 = vmatprep.mubr.f32.mxu0 0.0
  %257 = vmatmul.mubr.f32.gmra.mxu0 %v114
  %v258 = vpop.f32.mrf.mxu0
  %v259 = vadd.f32 %v81, %v258
  %v260 = vpop.f32.mrf.mxu0
  %v261 = vadd.f32 %v85, %v260
  %262 = vmatprep.mubr.f32.mxu0 0.0
  %263 = vmatmul.mubr.f32.gmra.mxu0 %v117
  %v264 = vpop.f32.mrf.mxu0
  %v265 = vadd.f32 %v81, %v264
  %v266 = vpop.f32.mrf.mxu0
  %v267 = vadd.f32 %v85, %v266
  %268 = vmatprep.mubr.f32.mxu0 0.0
  %269 = vmatmul.mubr.f32.gmra.mxu0 %v120
  %v270 = vpop.f32.mrf.mxu0
  %v271 = vadd.f32 %v81, %v270
  %v272 = vpop.f32.mrf.mxu0
  %v273 = vadd.f32 %v85, %v272
  %274 = vmatprep.mubr.f32.mxu0 0.0
  %275 = vmatmul.mubr.f32.gmra.mxu0 %v123
  %v276 = vpop.f32.mrf.mxu0
  %v277 = vadd.f32 %v81, %v276
  %v278 = vpop.f32.mrf.mxu0
  %v279 = vadd.f32 %v85, %v278
  %280 = vmatprep.mubr.f32.mxu0 0.0
  %281 = vmatmul.mubr.f32.gmra.mxu0 %v126
  %v282 = vpop.f32.mrf.mxu0
  %v283 = vadd.f32 %v81, %v282
  %v284 = vpop.f32.mrf.mxu0
  %v285 = vadd.f32 %v85, %v284
  %286 = vmatprep.mubr.f32.mxu0 0.0
  %287 = vmatmul.mubr.f32.gmra.mxu0 %v129
  %v288 = vpop.f32.mrf.mxu0
  %v289 = vadd.f32 %v81, %v288
  %v290 = vpop.f32.mrf.mxu0
  %v291 = vadd.f32 %v85, %v290
  %292 = vmatprep.mubr.f32.mxu0 0.0
  %293 = vmatmul.mubr.f32.gmra.mxu0 %v132
  %v294 = vpop.f32.mrf.mxu0
  %v295 = vadd.f32 %v81, %v294
  %v296 = vpop.f32.mrf.mxu0
  %v297 = vadd.f32 %v85, %v296
  %298 = vmatprep.mubr.f32.mxu0 0.0
  %299 = vmatmul.mubr.f32.gmra.mxu0 %v135
  %v300 = vpop.f32.mrf.mxu0
  %v301 = vadd.f32 %v81, %v300
  %v302 = vpop.f32.mrf.mxu0
  %v303 = vadd.f32 %v85, %v302
  %304 = vdwg.mxu0
  %v305 = vmax.f32 %v211, 0.0
  %v306 = vmax.f32 %v213, 0.0
  %v307 = vmax.f32 %v217, 0.0
  %v308 = vmax.f32 %v219, 0.0
  %v309 = vmax.f32 %v223, 0.0
  %v310 = vmax.f32 %v225, 0.0
  %v311 = vmax.f32 %v229, 0.0
  %v312 = vmax.f32 %v231, 0.0
  %v313 = vmax.f32 %v235, 0.0
  %v314 = vmax.f32 %v237, 0.0
  %v315 = vmax.f32 %v241, 0.0
  %v316 = vmax.f32 %v243, 0.0
  %v317 = vmax.f32 %v247, 0.0
  %v318 = vmax.f32 %v249, 0.0
  %v319 = vmax.f32 %v253, 0.0
  %v320 = vmax.f32 %v255, 0.0
  %v321 = vmax.f32 %v259, 0.0
  %v322 = vmax.f32 %v261, 0.0
  %v323 = vmax.f32 %v265, 0.0
  %v324 = vmax.f32 %v267, 0.0
  %v325 = vmax.f32 %v271, 0.0
  %v326 = vmax.f32 %v273, 0.0
  %v327 = vmax.f32 %v277, 0.0
  %v328 = vmax.f32 %v279, 0.0
  %v329 = vmax.f32 %v283, 0.0
  %v330 = vmax.f32 %v285, 0.0
  %v331 = vmax.f32 %v289, 0.0
  %v332 = vmax.f32 %v291, 0.0
  %v333 = vmax.f32 %v295, 0.0
  %v334 = vmax.f32 %v297, 0.0
  %v335 = vmax.f32 %v301, 0.0
  %v336 = vmax.f32 %v303, 0.0
  %v337 = vld [vmem:[%s3] sm:$0xff]
  %v338 = vld [vmem:[%s3 + $0x8] sm:$0xff]
  %v339 = vld [vmem:[%s3 + $0x10] sm:$0xff]
  %v340 = vld [vmem:[%s3 + $0x18] sm:$0xff]
  %v341 = vld [vmem:[%s3 + $0x20] sm:$0xff]
  %v342 = vld [vmem:[%s3 + $0x28] sm:$0xff]
  %v343 = vld [vmem:[%s3 + $0x30] sm:$0xff]
  %v344 = vld [vmem:[%s3 + $0x38] sm:$0xff]
  %v345 = vld [vmem:[%s3 + $0x40] sm:$0xff]
  %v346 = vld [vmem:[%s3 + $0x48] sm:$0xff]
  %v347 = vld [vmem:[%s3 + $0x50] sm:$0xff]
  %v348 = vld [vmem:[%s3 + $0x58] sm:$0xff]
  %v349 = vld [vmem:[%s3 + $0x60] sm:$0xff]
  %v350 = vld [vmem:[%s3 + $0x68] sm:$0xff]
  %v351 = vld [vmem:[%s3 + $0x70] sm:$0xff]
  %v352 = vld [vmem:[%s3 + $0x78] sm:$0xff]
  %v353 = vld [vmem:[%s3 + $0x80] sm:$0x3]
  %v354 = vld [vmem:[%s4] sm:$0x1]
  %v356 = vlaneseq
  %v357 = vshrl.u32 %v356, 7
  %v358 = vsub.s32 0, %v357
  %v359 = vrot.slane %v354, %v358
  %vm361 = vcmask 15360
  %v363 = vsel %vm361, %v306, 0
  %v366 = vsel %vm361, %v308, 0
  %v369 = vsel %vm361, %v310, 0
  %v372 = vsel %vm361, %v312, 0
  %v375 = vsel %vm361, %v314, 0
  %v378 = vsel %vm361, %v316, 0
  %v381 = vsel %vm361, %v318, 0
  %v384 = vsel %vm361, %v320, 0
  %v387 = vsel %vm361, %v322, 0
  %v390 = vsel %vm361, %v324, 0
  %v393 = vsel %vm361, %v326, 0
  %v396 = vsel %vm361, %v328, 0
  %v399 = vsel %vm361, %v330, 0
  %v402 = vsel %vm361, %v332, 0
  %v405 = vsel %vm361, %v334, 0
  %v408 = vsel %vm361, %v336, 0
  %vm410 = vcmask 1041408
  %v412 = vsel %vm410, %v353, 0
  %414 = vmatprep.subr.mxu0 0.0
  %415 = vmatpush1.msra.mxu0 %v352
  %416 = vmatprep.subr.mxu0 0.0
  %417 = vmatpush1.msra.mxu0 %v351
  %418 = vmatprep.subr.mxu0 0.0
  %419 = vmatpush1.msra.mxu0 %v350
  %420 = vmatprep.subr.mxu0 0.0
  %421 = vmatpush1.msra.mxu0 %v349
  %422 = vmatprep.subr.mxu0 0.0
  %423 = vmatpush1.msra.mxu0 %v348
  %424 = vmatprep.subr.mxu0 0.0
  %425 = vmatpush1.msra.mxu0 %v347
  %426 = vmatprep.subr.mxu0 0.0
  %427 = vmatpush1.msra.mxu0 %v346
  %428 = vmatprep.subr.mxu0 0.0
  %429 = vmatpush1.msra.mxu0 %v345
  %430 = vmatprep.subr.mxu0 0.0
  %431 = vmatpush1.msra.mxu0 %v344
  %432 = vmatprep.subr.mxu0 0.0
  %433 = vmatpush1.msra.mxu0 %v343
  %434 = vmatprep.subr.mxu0 0.0
  %435 = vmatpush1.msra.mxu0 %v342
  %436 = vmatprep.subr.mxu0 0.0
  %437 = vmatpush1.msra.mxu0 %v341
  %438 = vmatprep.subr.mxu0 0.0
  %439 = vmatpush1.msra.mxu0 %v340
  %440 = vmatprep.subr.mxu0 0.0
  %441 = vmatpush1.msra.mxu0 %v339
  %442 = vmatprep.subr.mxu0 0.0
  %443 = vmatpush1.msra.mxu0 %v338
  %444 = vmatprep.subr.mxu0 0.0
  %445 = vmatpush1.msra.mxu0 %v337
  %446 = vmatprep.subr.mxu0 0.0
  %447 = vmatpush2.msra.mxu0 0.0
  %448 = vmatprep.subr.mxu0 0.0
  %449 = vmatpush2.msra.mxu0 0.0
  %450 = vmatprep.subr.mxu0 0.0
  %451 = vmatpush2.msra.mxu0 0.0
  %452 = vmatprep.subr.mxu0 0.0
  %453 = vmatpush2.msra.mxu0 0.0
  %454 = vmatprep.subr.mxu0 0.0
  %455 = vmatpush2.msra.mxu0 0.0
  %456 = vmatprep.subr.mxu0 0.0
  %457 = vmatpush2.msra.mxu0 0.0
  %458 = vmatprep.subr.mxu0 0.0
  %459 = vmatpush2.msra.mxu0 0.0
  %460 = vmatprep.subr.mxu0 0.0
  %461 = vmatpush2.msra.mxu0 0.0
  %462 = vmatprep.subr.mxu0 0.0
  %463 = vmatpush2.msra.mxu0 0.0
  %464 = vmatprep.subr.mxu0 0.0
  %465 = vmatpush2.msra.mxu0 0.0
  %466 = vmatprep.subr.mxu0 0.0
  %467 = vmatpush2.msra.mxu0 0.0
  %468 = vmatprep.subr.mxu0 0.0
  %469 = vmatpush2.msra.mxu0 0.0
  %470 = vmatprep.subr.mxu0 0.0
  %471 = vmatpush2.msra.mxu0 0.0
  %472 = vmatprep.subr.mxu0 0.0
  %473 = vmatpush2.msra.mxu0 0.0
  %474 = vmatprep.subr.mxu0 0.0
  %475 = vmatpush2.msra.mxu0 0.0
  %476 = vmatprep.subr.mxu0 0.0
  %477 = vmatpush2.msra.mxu0 %v412
  %478 = vmatprep.mubr.f32.mxu0 %v363
  %479 = vmatmul.mubr.f32.gmra.mxu0 %v305
  %v480 = vpop.f32.mrf.mxu0
  %v481 = vadd.f32 %v359, %v480
  %v482 = vpop.f32.mrf.mxu0
  %483 = vmatprep.mubr.f32.mxu0 %v366
  %484 = vmatmul.mubr.f32.gmra.mxu0 %v307
  %v485 = vpop.f32.mrf.mxu0
  %v486 = vadd.f32 %v359, %v485
  %v487 = vpop.f32.mrf.mxu0
  %488 = vmatprep.mubr.f32.mxu0 %v369
  %489 = vmatmul.mubr.f32.gmra.mxu0 %v309
  %v490 = vpop.f32.mrf.mxu0
  %v491 = vadd.f32 %v359, %v490
  %v492 = vpop.f32.mrf.mxu0
  %493 = vmatprep.mubr.f32.mxu0 %v372
  %494 = vmatmul.mubr.f32.gmra.mxu0 %v311
  %v495 = vpop.f32.mrf.mxu0
  %v496 = vadd.f32 %v359, %v495
  %v497 = vpop.f32.mrf.mxu0
  %498 = vmatprep.mubr.f32.mxu0 %v375
  %499 = vmatmul.mubr.f32.gmra.mxu0 %v313
  %v500 = vpop.f32.mrf.mxu0
  %v501 = vadd.f32 %v359, %v500
  %v502 = vpop.f32.mrf.mxu0
  %503 = vmatprep.mubr.f32.mxu0 %v378
  %504 = vmatmul.mubr.f32.gmra.mxu0 %v315
  %v505 = vpop.f32.mrf.mxu0
  %v506 = vadd.f32 %v359, %v505
  %v507 = vpop.f32.mrf.mxu0
  %508 = vmatprep.mubr.f32.mxu0 %v381
  %509 = vmatmul.mubr.f32.gmra.mxu0 %v317
  %v510 = vpop.f32.mrf.mxu0
  %v511 = vadd.f32 %v359, %v510
  %v512 = vpop.f32.mrf.mxu0
  %513 = vmatprep.mubr.f32.mxu0 %v384
  %514 = vmatmul.mubr.f32.gmra.mxu0 %v319
  %v515 = vpop.f32.mrf.mxu0
  %v516 = vadd.f32 %v359, %v515
  %v517 = vpop.f32.mrf.mxu0
  %518 = vmatprep.mubr.f32.mxu0 %v387
  %519 = vmatmul.mubr.f32.gmra.mxu0 %v321
  %v520 = vpop.f32.mrf.mxu0
  %v521 = vadd.f32 %v359, %v520
  %v522 = vpop.f32.mrf.mxu0
  %523 = vmatprep.mubr.f32.mxu0 %v390
  %524 = vmatmul.mubr.f32.gmra.mxu0 %v323
  %v525 = vpop.f32.mrf.mxu0
  %v526 = vadd.f32 %v359, %v525
  %v527 = vpop.f32.mrf.mxu0
  %528 = vmatprep.mubr.f32.mxu0 %v393
  %529 = vmatmul.mubr.f32.gmra.mxu0 %v325
  %v530 = vpop.f32.mrf.mxu0
  %v531 = vadd.f32 %v359, %v530
  %v532 = vpop.f32.mrf.mxu0
  %533 = vmatprep.mubr.f32.mxu0 %v396
  %534 = vmatmul.mubr.f32.gmra.mxu0 %v327
  %v535 = vpop.f32.mrf.mxu0
  %v536 = vadd.f32 %v359, %v535
  %v537 = vpop.f32.mrf.mxu0
  %538 = vmatprep.mubr.f32.mxu0 %v399
  %539 = vmatmul.mubr.f32.gmra.mxu0 %v329
  %v540 = vpop.f32.mrf.mxu0
  %v541 = vadd.f32 %v359, %v540
  %v542 = vpop.f32.mrf.mxu0
  %543 = vmatprep.mubr.f32.mxu0 %v402
  %544 = vmatmul.mubr.f32.gmra.mxu0 %v331
  %v545 = vpop.f32.mrf.mxu0
  %v546 = vadd.f32 %v359, %v545
  %v547 = vpop.f32.mrf.mxu0
  %548 = vmatprep.mubr.f32.mxu0 %v405
  %549 = vmatmul.mubr.f32.gmra.mxu0 %v333
  %v550 = vpop.f32.mrf.mxu0
  %v551 = vadd.f32 %v359, %v550
  %v552 = vpop.f32.mrf.mxu0
  %553 = vmatprep.mubr.f32.mxu0 %v408
  %554 = vmatmul.mubr.f32.gmra.mxu0 %v335
  %v555 = vpop.f32.mrf.mxu0
  %v556 = vadd.f32 %v359, %v555
  %v557 = vpop.f32.mrf.mxu0
  %558 = vdwg.mxu0
  %v559 = vmax.f32 %v481, 0.0
  %v560 = vmax.f32 %v486, 0.0
  %v561 = vmax.f32 %v491, 0.0
  %v562 = vmax.f32 %v496, 0.0
  %v563 = vmax.f32 %v501, 0.0
  %v564 = vmax.f32 %v506, 0.0
  %v565 = vmax.f32 %v511, 0.0
  %v566 = vmax.f32 %v516, 0.0
  %v567 = vmax.f32 %v521, 0.0
  %v568 = vmax.f32 %v526, 0.0
  %v569 = vmax.f32 %v531, 0.0
  %v570 = vmax.f32 %v536, 0.0
  %v571 = vmax.f32 %v541, 0.0
  %v572 = vmax.f32 %v546, 0.0
  %v573 = vmax.f32 %v551, 0.0
  %v574 = vmax.f32 %v556, 0.0
  %v575 = vld [vmem:[%s5] sm:$0xff]
  %v576 = vld [vmem:[%s5 + $0x8] sm:$0xff]
  %v577 = vld [vmem:[%s5 + $0x10] sm:$0xff]
  %v578 = vld [vmem:[%s5 + $0x18] sm:$0xff]
  %v579 = vld [vmem:[%s5 + $0x20] sm:$0xff]
  %v580 = vld [vmem:[%s5 + $0x28] sm:$0xff]
  %v581 = vld [vmem:[%s5 + $0x30] sm:$0xff]
  %v582 = vld [vmem:[%s5 + $0x38] sm:$0xff]
  %v583 = vld [vmem:[%s5 + $0x40] sm:$0xff]
  %v584 = vld [vmem:[%s5 + $0x48] sm:$0xff]
  %v585 = vld [vmem:[%s5 + $0x50] sm:$0xff]
  %v586 = vld [vmem:[%s5 + $0x58] sm:$0xff]
  %v587 = vld [vmem:[%s5 + $0x60] sm:$0xf]
  %v588 = vld [vmem:[%s6] sm:$0x1]
  %v590 = vlaneseq
  %v591 = vshrl.u32 %v590, 7
  %v592 = vsub.s32 0, %v591
  %v593 = vrot.slane %v588, %v592
  %vm595 = vcmask 818176
  %v597 = vsel %vm595, %v559, 0
  %v600 = vsel %vm595, %v560, 0
  %v603 = vsel %vm595, %v561, 0
  %v606 = vsel %vm595, %v562, 0
  %v609 = vsel %vm595, %v563, 0
  %v612 = vsel %vm595, %v564, 0
  %v615 = vsel %vm595, %v565, 0
  %v618 = vsel %vm595, %v566, 0
  %v621 = vsel %vm595, %v567, 0
  %v624 = vsel %vm595, %v568, 0
  %v627 = vsel %vm595, %v569, 0
  %v630 = vsel %vm595, %v570, 0
  %v633 = vsel %vm595, %v571, 0
  %v636 = vsel %vm595, %v572, 0
  %v639 = vsel %vm595, %v573, 0
  %v642 = vsel %vm595, %v574, 0
  %vm644 = vcmask 1043456
  %v646 = vsel %vm644, %v587, 0
  %648 = vmatprep.subr.mxu0 0.0
  %649 = vmatpush1.msra.mxu0 0.0
  %650 = vmatprep.subr.mxu0 0.0
  %651 = vmatpush1.msra.mxu0 0.0
  %652 = vmatprep.subr.mxu0 0.0
  %653 = vmatpush1.msra.mxu0 0.0
  %654 = vmatprep.subr.mxu0 0.0
  %655 = vmatpush1.msra.mxu0 %v646
  %656 = vmatprep.subr.mxu0 0.0
  %657 = vmatpush1.msra.mxu0 %v586
  %658 = vmatprep.subr.mxu0 0.0
  %659 = vmatpush1.msra.mxu0 %v585
  %660 = vmatprep.subr.mxu0 0.0
  %661 = vmatpush1.msra.mxu0 %v584
  %662 = vmatprep.subr.mxu0 0.0
  %663 = vmatpush1.msra.mxu0 %v583
  %664 = vmatprep.subr.mxu0 0.0
  %665 = vmatpush1.msra.mxu0 %v582
  %666 = vmatprep.subr.mxu0 0.0
  %667 = vmatpush1.msra.mxu0 %v581
  %668 = vmatprep.subr.mxu0 0.0
  %669 = vmatpush1.msra.mxu0 %v580
  %670 = vmatprep.subr.mxu0 0.0
  %671 = vmatpush1.msra.mxu0 %v579
  %672 = vmatprep.subr.mxu0 0.0
  %673 = vmatpush1.msra.mxu0 %v578
  %674 = vmatprep.subr.mxu0 0.0
  %675 = vmatpush1.msra.mxu0 %v577
  %676 = vmatprep.subr.mxu0 0.0
  %677 = vmatpush1.msra.mxu0 %v576
  %678 = vmatprep.subr.mxu0 0.0
  %679 = vmatpush1.msra.mxu0 %v575
  %680 = vmatprep.subr.mxu0 0.0
  %681 = vmatpush2.msra.mxu0 0.0
  %682 = vmatprep.subr.mxu0 0.0
  %683 = vmatpush2.msra.mxu0 0.0
  %684 = vmatprep.subr.mxu0 0.0
  %685 = vmatpush2.msra.mxu0 0.0
  %686 = vmatprep.subr.mxu0 0.0
  %687 = vmatpush2.msra.mxu0 0.0
  %688 = vmatprep.subr.mxu0 0.0
  %689 = vmatpush2.msra.mxu0 0.0
  %690 = vmatprep.subr.mxu0 0.0
  %691 = vmatpush2.msra.mxu0 0.0
  %692 = vmatprep.subr.mxu0 0.0
  %693 = vmatpush2.msra.mxu0 0.0
  %694 = vmatprep.subr.mxu0 0.0
  %695 = vmatpush2.msra.mxu0 0.0
  %696 = vmatprep.subr.mxu0 0.0
  %697 = vmatpush2.msra.mxu0 0.0
  %698 = vmatprep.subr.mxu0 0.0
  %699 = vmatpush2.msra.mxu0 0.0
  %700 = vmatprep.subr.mxu0 0.0
  %701 = vmatpush2.msra.mxu0 0.0
  %702 = vmatprep.subr.mxu0 0.0
  %703 = vmatpush2.msra.mxu0 0.0
  %704 = vmatprep.subr.mxu0 0.0
  %705 = vmatpush2.msra.mxu0 0.0
  %706 = vmatprep.subr.mxu0 0.0
  %707 = vmatpush2.msra.mxu0 0.0
  %708 = vmatprep.subr.mxu0 0.0
  %709 = vmatpush2.msra.mxu0 0.0
  %710 = vmatprep.subr.mxu0 0.0
  %711 = vmatpush2.msra.mxu0 0.0
  %712 = vmatprep.mubr.f32.mxu0 0.0
  %713 = vmatmul.mubr.f32.gmra.mxu0 %v597
  %v714 = vpop.f32.mrf.mxu0
  %v715 = vadd.f32 %v593, %v714
  %v716 = vpop.f32.mrf.mxu0
  %717 = vmatprep.mubr.f32.mxu0 0.0
  %718 = vmatmul.mubr.f32.gmra.mxu0 %v600
  %v719 = vpop.f32.mrf.mxu0
  %v720 = vadd.f32 %v593, %v719
  %v721 = vpop.f32.mrf.mxu0
  %722 = vmatprep.mubr.f32.mxu0 0.0
  %723 = vmatmul.mubr.f32.gmra.mxu0 %v603
  %v724 = vpop.f32.mrf.mxu0
  %v725 = vadd.f32 %v593, %v724
  %v726 = vpop.f32.mrf.mxu0
  %727 = vmatprep.mubr.f32.mxu0 0.0
  %728 = vmatmul.mubr.f32.gmra.mxu0 %v606
  %v729 = vpop.f32.mrf.mxu0
  %v730 = vadd.f32 %v593, %v729
  %v731 = vpop.f32.mrf.mxu0
  %732 = vmatprep.mubr.f32.mxu0 0.0
  %733 = vmatmul.mubr.f32.gmra.mxu0 %v609
  %v734 = vpop.f32.mrf.mxu0
  %v735 = vadd.f32 %v593, %v734
  %v736 = vpop.f32.mrf.mxu0
  %737 = vmatprep.mubr.f32.mxu0 0.0
  %738 = vmatmul.mubr.f32.gmra.mxu0 %v612
  %v739 = vpop.f32.mrf.mxu0
  %v740 = vadd.f32 %v593, %v739
  %v741 = vpop.f32.mrf.mxu0
  %742 = vmatprep.mubr.f32.mxu0 0.0
  %743 = vmatmul.mubr.f32.gmra.mxu0 %v615
  %v744 = vpop.f32.mrf.mxu0
  %v745 = vadd.f32 %v593, %v744
  %v746 = vpop.f32.mrf.mxu0
  %747 = vmatprep.mubr.f32.mxu0 0.0
  %748 = vmatmul.mubr.f32.gmra.mxu0 %v618
  %v749 = vpop.f32.mrf.mxu0
  %v750 = vadd.f32 %v593, %v749
  %v751 = vpop.f32.mrf.mxu0
  %752 = vmatprep.mubr.f32.mxu0 0.0
  %753 = vmatmul.mubr.f32.gmra.mxu0 %v621
  %v754 = vpop.f32.mrf.mxu0
  %v755 = vadd.f32 %v593, %v754
  %v756 = vpop.f32.mrf.mxu0
  %757 = vmatprep.mubr.f32.mxu0 0.0
  %758 = vmatmul.mubr.f32.gmra.mxu0 %v624
  %v759 = vpop.f32.mrf.mxu0
  %v760 = vadd.f32 %v593, %v759
  %v761 = vpop.f32.mrf.mxu0
  %762 = vmatprep.mubr.f32.mxu0 0.0
  %763 = vmatmul.mubr.f32.gmra.mxu0 %v627
  %v764 = vpop.f32.mrf.mxu0
  %v765 = vadd.f32 %v593, %v764
  %v766 = vpop.f32.mrf.mxu0
  %767 = vmatprep.mubr.f32.mxu0 0.0
  %768 = vmatmul.mubr.f32.gmra.mxu0 %v630
  %v769 = vpop.f32.mrf.mxu0
  %v770 = vadd.f32 %v593, %v769
  %v771 = vpop.f32.mrf.mxu0
  %772 = vmatprep.mubr.f32.mxu0 0.0
  %773 = vmatmul.mubr.f32.gmra.mxu0 %v633
  %v774 = vpop.f32.mrf.mxu0
  %v775 = vadd.f32 %v593, %v774
  %v776 = vpop.f32.mrf.mxu0
  %777 = vmatprep.mubr.f32.mxu0 0.0
  %778 = vmatmul.mubr.f32.gmra.mxu0 %v636
  %v779 = vpop.f32.mrf.mxu0
  %v780 = vadd.f32 %v593, %v779
  %v781 = vpop.f32.mrf.mxu0
  %782 = vmatprep.mubr.f32.mxu0 0.0
  %783 = vmatmul.mubr.f32.gmra.mxu0 %v639
  %v784 = vpop.f32.mrf.mxu0
  %v785 = vadd.f32 %v593, %v784
  %v786 = vpop.f32.mrf.mxu0
  %787 = vmatprep.mubr.f32.mxu0 0.0
  %788 = vmatmul.mubr.f32.gmra.mxu0 %v642
  %v789 = vpop.f32.mrf.mxu0
  %v790 = vadd.f32 %v593, %v789
  %v791 = vpop.f32.mrf.mxu0
  %792 = vdwg.mxu0
  %v793 = vmax.f32 %v715, 0.0
  %v794 = vmax.f32 %v720, 0.0
  %v795 = vmax.f32 %v725, 0.0
  %v796 = vmax.f32 %v730, 0.0
  %v797 = vmax.f32 %v735, 0.0
  %v798 = vmax.f32 %v740, 0.0
  %v799 = vmax.f32 %v745, 0.0
  %v800 = vmax.f32 %v750, 0.0
  %v801 = vmax.f32 %v755, 0.0
  %v802 = vmax.f32 %v760, 0.0
  %v803 = vmax.f32 %v765, 0.0
  %v804 = vmax.f32 %v770, 0.0
  %v805 = vmax.f32 %v775, 0.0
  %v806 = vmax.f32 %v780, 0.0
  %v807 = vmax.f32 %v785, 0.0
  %v808 = vmax.f32 %v790, 0.0
  %v809 = vld [vmem:[%s7] sm:$0xff]
  %v810 = vld [vmem:[%s7 + $0x8] sm:$0xff]
  %v811 = vld [vmem:[%s7 + $0x10] sm:$0xff]
  %v812 = vld [vmem:[%s7 + $0x18] sm:$0xff]
  %v813 = vld [vmem:[%s7 + $0x20] sm:$0xff]
  %v814 = vld [vmem:[%s7 + $0x28] sm:$0xff]
  %v815 = vld [vmem:[%s7 + $0x30] sm:$0xff]
  %v816 = vld [vmem:[%s7 + $0x38] sm:$0xff]
  %v817 = vld [vmem:[%s7 + $0x40] sm:$0x3f]
  %v818 = vld [vmem:[%s8] sm:$0x1]
  %v820 = vlaneseq
  %v821 = vshrl.u32 %v820, 7
  %v822 = vsub.s32 0, %v821
  %v823 = vrot.slane %v818, %v822
  %vm825 = vcmask 572416
  %v827 = vsel %vm825, %v793, 0
  %v830 = vsel %vm825, %v794, 0
  %v833 = vsel %vm825, %v795, 0
  %v836 = vsel %vm825, %v796, 0
  %v839 = vsel %vm825, %v797, 0
  %v842 = vsel %vm825, %v798, 0
  %v845 = vsel %vm825, %v799, 0
  %v848 = vsel %vm825, %v800, 0
  %v851 = vsel %vm825, %v801, 0
  %v854 = vsel %vm825, %v802, 0
  %v857 = vsel %vm825, %v803, 0
  %v860 = vsel %vm825, %v804, 0
  %v863 = vsel %vm825, %v805, 0
  %v866 = vsel %vm825, %v806, 0
  %v869 = vsel %vm825, %v807, 0
  %v872 = vsel %vm825, %v808, 0
  %vm874 = vcmask 1045504
  %v876 = vsel %vm874, %v817, 0
  %878 = vmatprep.subr.mxu0 0.0
  %879 = vmatpush1.msra.mxu0 0.0
  %880 = vmatprep.subr.mxu0 0.0
  %881 = vmatpush1.msra.mxu0 0.0
  %882 = vmatprep.subr.mxu0 0.0
  %883 = vmatpush1.msra.mxu0 0.0
  %884 = vmatprep.subr.mxu0 0.0
  %885 = vmatpush1.msra.mxu0 0.0
  %886 = vmatprep.subr.mxu0 0.0
  %887 = vmatpush1.msra.mxu0 0.0
  %888 = vmatprep.subr.mxu0 0.0
  %889 = vmatpush1.msra.mxu0 0.0
  %890 = vmatprep.subr.mxu0 0.0
  %891 = vmatpush1.msra.mxu0 0.0
  %892 = vmatprep.subr.mxu0 0.0
  %893 = vmatpush1.msra.mxu0 %v876
  %894 = vmatprep.subr.mxu0 0.0
  %895 = vmatpush1.msra.mxu0 %v816
  %896 = vmatprep.subr.mxu0 0.0
  %897 = vmatpush1.msra.mxu0 %v815
  %898 = vmatprep.subr.mxu0 0.0
  %899 = vmatpush1.msra.mxu0 %v814
  %900 = vmatprep.subr.mxu0 0.0
  %901 = vmatpush1.msra.mxu0 %v813
  %902 = vmatprep.subr.mxu0 0.0
  %903 = vmatpush1.msra.mxu0 %v812
  %904 = vmatprep.subr.mxu0 0.0
  %905 = vmatpush1.msra.mxu0 %v811
  %906 = vmatprep.subr.mxu0 0.0
  %907 = vmatpush1.msra.mxu0 %v810
  %908 = vmatprep.subr.mxu0 0.0
  %909 = vmatpush1.msra.mxu0 %v809
  %910 = vmatprep.subr.mxu0 0.0
  %911 = vmatpush2.msra.mxu0 0.0
  %912 = vmatprep.subr.mxu0 0.0
  %913 = vmatpush2.msra.mxu0 0.0
  %914 = vmatprep.subr.mxu0 0.0
  %915 = vmatpush2.msra.mxu0 0.0
  %916 = vmatprep.subr.mxu0 0.0
  %917 = vmatpush2.msra.mxu0 0.0
  %918 = vmatprep.subr.mxu0 0.0
  %919 = vmatpush2.msra.mxu0 0.0
  %920 = vmatprep.subr.mxu0 0.0
  %921 = vmatpush2.msra.mxu0 0.0
  %922 = vmatprep.subr.mxu0 0.0
  %923 = vmatpush2.msra.mxu0 0.0
  %924 = vmatprep.subr.mxu0 0.0
  %925 = vmatpush2.msra.mxu0 0.0
  %926 = vmatprep.subr.mxu0 0.0
  %927 = vmatpush2.msra.mxu0 0.0
  %928 = vmatprep.subr.mxu0 0.0
  %929 = vmatpush2.msra.mxu0 0.0
  %930 = vmatprep.subr.mxu0 0.0
  %931 = vmatpush2.msra.mxu0 0.0
  %932 = vmatprep.subr.mxu0 0.0
  %933 = vmatpush2.msra.mxu0 0.0
  %934 = vmatprep.subr.mxu0 0.0
  %935 = vmatpush2.msra.mxu0 0.0
  %936 = vmatprep.subr.mxu0 0.0
  %937 = vmatpush2.msra.mxu0 0.0
  %938 = vmatprep.subr.mxu0 0.0
  %939 = vmatpush2.msra.mxu0 0.0
  %940 = vmatprep.subr.mxu0 0.0
  %941 = vmatpush2.msra.mxu0 0.0
  %942 = vmatprep.mubr.f32.mxu0 0.0
  %943 = vmatmul.mubr.f32.gmra.mxu0 %v827
  %v944 = vpop.f32.mrf.mxu0
  %v945 = vadd.f32 %v823, %v944
  %v946 = vpop.f32.mrf.mxu0
  %947 = vmatprep.mubr.f32.mxu0 0.0
  %948 = vmatmul.mubr.f32.gmra.mxu0 %v830
  %v949 = vpop.f32.mrf.mxu0
  %v950 = vadd.f32 %v823, %v949
  %v951 = vpop.f32.mrf.mxu0
  %952 = vmatprep.mubr.f32.mxu0 0.0
  %953 = vmatmul.mubr.f32.gmra.mxu0 %v833
  %v954 = vpop.f32.mrf.mxu0
  %v955 = vadd.f32 %v823, %v954
  %v956 = vpop.f32.mrf.mxu0
  %957 = vmatprep.mubr.f32.mxu0 0.0
  %958 = vmatmul.mubr.f32.gmra.mxu0 %v836
  %v959 = vpop.f32.mrf.mxu0
  %v960 = vadd.f32 %v823, %v959
  %v961 = vpop.f32.mrf.mxu0
  %962 = vmatprep.mubr.f32.mxu0 0.0
  %963 = vmatmul.mubr.f32.gmra.mxu0 %v839
  %v964 = vpop.f32.mrf.mxu0
  %v965 = vadd.f32 %v823, %v964
  %v966 = vpop.f32.mrf.mxu0
  %967 = vmatprep.mubr.f32.mxu0 0.0
  %968 = vmatmul.mubr.f32.gmra.mxu0 %v842
  %v969 = vpop.f32.mrf.mxu0
  %v970 = vadd.f32 %v823, %v969
  %v971 = vpop.f32.mrf.mxu0
  %972 = vmatprep.mubr.f32.mxu0 0.0
  %973 = vmatmul.mubr.f32.gmra.mxu0 %v845
  %v974 = vpop.f32.mrf.mxu0
  %v975 = vadd.f32 %v823, %v974
  %v976 = vpop.f32.mrf.mxu0
  %977 = vmatprep.mubr.f32.mxu0 0.0
  %978 = vmatmul.mubr.f32.gmra.mxu0 %v848
  %v979 = vpop.f32.mrf.mxu0
  %v980 = vadd.f32 %v823, %v979
  %v981 = vpop.f32.mrf.mxu0
  %982 = vmatprep.mubr.f32.mxu0 0.0
  %983 = vmatmul.mubr.f32.gmra.mxu0 %v851
  %v984 = vpop.f32.mrf.mxu0
  %v985 = vadd.f32 %v823, %v984
  %v986 = vpop.f32.mrf.mxu0
  %987 = vmatprep.mubr.f32.mxu0 0.0
  %988 = vmatmul.mubr.f32.gmra.mxu0 %v854
  %v989 = vpop.f32.mrf.mxu0
  %v990 = vadd.f32 %v823, %v989
  %v991 = vpop.f32.mrf.mxu0
  %992 = vmatprep.mubr.f32.mxu0 0.0
  %993 = vmatmul.mubr.f32.gmra.mxu0 %v857
  %v994 = vpop.f32.mrf.mxu0
  %v995 = vadd.f32 %v823, %v994
  %v996 = vpop.f32.mrf.mxu0
  %997 = vmatprep.mubr.f32.mxu0 0.0
  %998 = vmatmul.mubr.f32.gmra.mxu0 %v860
  %v999 = vpop.f32.mrf.mxu0
  %v1000 = vadd.f32 %v823, %v999
  %v1001 = vpop.f32.mrf.mxu0
  %1002 = vmatprep.mubr.f32.mxu0 0.0
  %1003 = vmatmul.mubr.f32.gmra.mxu0 %v863
  %v1004 = vpop.f32.mrf.mxu0
  %v1005 = vadd.f32 %v823, %v1004
  %v1006 = vpop.f32.mrf.mxu0
  %1007 = vmatprep.mubr.f32.mxu0 0.0
  %1008 = vmatmul.mubr.f32.gmra.mxu0 %v866
  %v1009 = vpop.f32.mrf.mxu0
  %v1010 = vadd.f32 %v823, %v1009
  %v1011 = vpop.f32.mrf.mxu0
  %1012 = vmatprep.mubr.f32.mxu0 0.0
  %1013 = vmatmul.mubr.f32.gmra.mxu0 %v869
  %v1014 = vpop.f32.mrf.mxu0
  %v1015 = vadd.f32 %v823, %v1014
  %v1016 = vpop.f32.mrf.mxu0
  %1017 = vmatprep.mubr.f32.mxu0 0.0
  %1018 = vmatmul.mubr.f32.gmra.mxu0 %v872
  %v1019 = vpop.f32.mrf.mxu0
  %v1020 = vadd.f32 %v823, %v1019
  %v1021 = vpop.f32.mrf.mxu0
  %1022 = vdwg.mxu0
  %v1023 = vmax.f32 %v945, 0.0
  %v1024 = vmax.f32 %v950, 0.0
  %v1025 = vmax.f32 %v955, 0.0
  %v1026 = vmax.f32 %v960, 0.0
  %v1027 = vmax.f32 %v965, 0.0
  %v1028 = vmax.f32 %v970, 0.0
  %v1029 = vmax.f32 %v975, 0.0
  %v1030 = vmax.f32 %v980, 0.0
  %v1031 = vmax.f32 %v985, 0.0
  %v1032 = vmax.f32 %v990, 0.0
  %v1033 = vmax.f32 %v995, 0.0
  %v1034 = vmax.f32 %v1000, 0.0
  %v1035 = vmax.f32 %v1005, 0.0
  %v1036 = vmax.f32 %v1010, 0.0
  %v1037 = vmax.f32 %v1015, 0.0
  %v1038 = vmax.f32 %v1020, 0.0
  %v1039 = vld [vmem:[%s9] sm:$0xff]
  %v1040 = vld [vmem:[%s9 + $0x8] sm:$0xff]
  %v1041 = vld [vmem:[%s9 + $0x10] sm:$0xff]
  %v1042 = vld [vmem:[%s9 + $0x18] sm:$0xff]
  %v1043 = vld [vmem:[%s9 + $0x20] sm:$0xff]
  %v1044 = vld [vmem:[%s10] sm:$0x1]
  %v1046 = vlaneseq
  %v1047 = vshrl.u32 %v1046, 7
  %v1048 = vsub.s32 0, %v1047
  %v1049 = vrot.slane %v1044, %v1048
  %vm1051 = vcmask 326656
  %v1053 = vsel %vm1051, %v1023, 0
  %v1056 = vsel %vm1051, %v1024, 0
  %v1059 = vsel %vm1051, %v1025, 0
  %v1062 = vsel %vm1051, %v1026, 0
  %v1065 = vsel %vm1051, %v1027, 0
  %v1068 = vsel %vm1051, %v1028, 0
  %v1071 = vsel %vm1051, %v1029, 0
  %v1074 = vsel %vm1051, %v1030, 0
  %v1077 = vsel %vm1051, %v1031, 0
  %v1080 = vsel %vm1051, %v1032, 0
  %v1083 = vsel %vm1051, %v1033, 0
  %v1086 = vsel %vm1051, %v1034, 0
  %v1089 = vsel %vm1051, %v1035, 0
  %v1092 = vsel %vm1051, %v1036, 0
  %v1095 = vsel %vm1051, %v1037, 0
  %v1098 = vsel %vm1051, %v1038, 0
  %1100 = vmatprep.subr.mxu0 0.0
  %1101 = vmatpush1.msra.mxu0 0.0
  %1102 = vmatprep.subr.mxu0 0.0
  %1103 = vmatpush1.msra.mxu0 0.0
  %1104 = vmatprep.subr.mxu0 0.0
  %1105 = vmatpush1.msra.mxu0 0.0
  %1106 = vmatprep.subr.mxu0 0.0
  %1107 = vmatpush1.msra.mxu0 0.0
  %1108 = vmatprep.subr.mxu0 0.0
  %1109 = vmatpush1.msra.mxu0 0.0
  %1110 = vmatprep.subr.mxu0 0.0
  %1111 = vmatpush1.msra.mxu0 0.0
  %1112 = vmatprep.subr.mxu0 0.0
  %1113 = vmatpush1.msra.mxu0 0.0
  %1114 = vmatprep.subr.mxu0 0.0
  %1115 = vmatpush1.msra.mxu0 0.0
  %1116 = vmatprep.subr.mxu0 0.0
  %1117 = vmatpush1.msra.mxu0 0.0
  %1118 = vmatprep.subr.mxu0 0.0
  %1119 = vmatpush1.msra.mxu0 0.0
  %1120 = vmatprep.subr.mxu0 0.0
  %1121 = vmatpush1.msra.mxu0 0.0
  %1122 = vmatprep.subr.mxu0 0.0
  %1123 = vmatpush1.msra.mxu0 %v1043
  %1124 = vmatprep.subr.mxu0 0.0
  %1125 = vmatpush1.msra.mxu0 %v1042
  %1126 = vmatprep.subr.mxu0 0.0
  %1127 = vmatpush1.msra.mxu0 %v1041
  %1128 = vmatprep.subr.mxu0 0.0
  %1129 = vmatpush1.msra.mxu0 %v1040
  %1130 = vmatprep.subr.mxu0 0.0
  %1131 = vmatpush1.msra.mxu0 %v1039
  %1132 = vmatprep.subr.mxu0 0.0
  %1133 = vmatpush2.msra.mxu0 0.0
  %1134 = vmatprep.subr.mxu0 0.0
  %1135 = vmatpush2.msra.mxu0 0.0
  %1136 = vmatprep.subr.mxu0 0.0
  %1137 = vmatpush2.msra.mxu0 0.0
  %1138 = vmatprep.subr.mxu0 0.0
  %1139 = vmatpush2.msra.mxu0 0.0
  %1140 = vmatprep.subr.mxu0 0.0
  %1141 = vmatpush2.msra.mxu0 0.0
  %1142 = vmatprep.subr.mxu0 0.0
  %1143 = vmatpush2.msra.mxu0 0.0
  %1144 = vmatprep.subr.mxu0 0.0
  %1145 = vmatpush2.msra.mxu0 0.0
  %1146 = vmatprep.subr.mxu0 0.0
  %1147 = vmatpush2.msra.mxu0 0.0
  %1148 = vmatprep.subr.mxu0 0.0
  %1149 = vmatpush2.msra.mxu0 0.0
  %1150 = vmatprep.subr.mxu0 0.0
  %1151 = vmatpush2.msra.mxu0 0.0
  %1152 = vmatprep.subr.mxu0 0.0
  %1153 = vmatpush2.msra.mxu0 0.0
  %1154 = vmatprep.subr.mxu0 0.0
  %1155 = vmatpush2.msra.mxu0 0.0
  %1156 = vmatprep.subr.mxu0 0.0
  %1157 = vmatpush2.msra.mxu0 0.0
  %1158 = vmatprep.subr.mxu0 0.0
  %1159 = vmatpush2.msra.mxu0 0.0
  %1160 = vmatprep.subr.mxu0 0.0
  %1161 = vmatpush2.msra.mxu0 0.0
  %1162 = vmatprep.subr.mxu0 0.0
  %1163 = vmatpush2.msra.mxu0 0.0
  %1164 = vmatprep.mubr.f32.mxu0 0.0
  %1165 = vmatmul.mubr.f32.gmra.mxu0 %v1053
  %v1166 = vpop.f32.mrf.mxu0
  %v1167 = vadd.f32 %v1049, %v1166
  %v1168 = vpop.f32.mrf.mxu0
  %1169 = vmatprep.mubr.f32.mxu0 0.0
  %1170 = vmatmul.mubr.f32.gmra.mxu0 %v1056
  %v1171 = vpop.f32.mrf.mxu0
  %v1172 = vadd.f32 %v1049, %v1171
  %v1173 = vpop.f32.mrf.mxu0
  %1174 = vmatprep.mubr.f32.mxu0 0.0
  %1175 = vmatmul.mubr.f32.gmra.mxu0 %v1059
  %v1176 = vpop.f32.mrf.mxu0
  %v1177 = vadd.f32 %v1049, %v1176
  %v1178 = vpop.f32.mrf.mxu0
  %1179 = vmatprep.mubr.f32.mxu0 0.0
  %1180 = vmatmul.mubr.f32.gmra.mxu0 %v1062
  %v1181 = vpop.f32.mrf.mxu0
  %v1182 = vadd.f32 %v1049, %v1181
  %v1183 = vpop.f32.mrf.mxu0
  %1184 = vmatprep.mubr.f32.mxu0 0.0
  %1185 = vmatmul.mubr.f32.gmra.mxu0 %v1065
  %v1186 = vpop.f32.mrf.mxu0
  %v1187 = vadd.f32 %v1049, %v1186
  %v1188 = vpop.f32.mrf.mxu0
  %1189 = vmatprep.mubr.f32.mxu0 0.0
  %1190 = vmatmul.mubr.f32.gmra.mxu0 %v1068
  %v1191 = vpop.f32.mrf.mxu0
  %v1192 = vadd.f32 %v1049, %v1191
  %v1193 = vpop.f32.mrf.mxu0
  %1194 = vmatprep.mubr.f32.mxu0 0.0
  %1195 = vmatmul.mubr.f32.gmra.mxu0 %v1071
  %v1196 = vpop.f32.mrf.mxu0
  %v1197 = vadd.f32 %v1049, %v1196
  %v1198 = vpop.f32.mrf.mxu0
  %1199 = vmatprep.mubr.f32.mxu0 0.0
  %1200 = vmatmul.mubr.f32.gmra.mxu0 %v1074
  %v1201 = vpop.f32.mrf.mxu0
  %v1202 = vadd.f32 %v1049, %v1201
  %v1203 = vpop.f32.mrf.mxu0
  %1204 = vmatprep.mubr.f32.mxu0 0.0
  %1205 = vmatmul.mubr.f32.gmra.mxu0 %v1077
  %v1206 = vpop.f32.mrf.mxu0
  %v1207 = vadd.f32 %v1049, %v1206
  %v1208 = vpop.f32.mrf.mxu0
  %1209 = vmatprep.mubr.f32.mxu0 0.0
  %1210 = vmatmul.mubr.f32.gmra.mxu0 %v1080
  %v1211 = vpop.f32.mrf.mxu0
  %v1212 = vadd.f32 %v1049, %v1211
  %v1213 = vpop.f32.mrf.mxu0
  %1214 = vmatprep.mubr.f32.mxu0 0.0
  %1215 = vmatmul.mubr.f32.gmra.mxu0 %v1083
  %v1216 = vpop.f32.mrf.mxu0
  %v1217 = vadd.f32 %v1049, %v1216
  %v1218 = vpop.f32.mrf.mxu0
  %1219 = vmatprep.mubr.f32.mxu0 0.0
  %1220 = vmatmul.mubr.f32.gmra.mxu0 %v1086
  %v1221 = vpop.f32.mrf.mxu0
  %v1222 = vadd.f32 %v1049, %v1221
  %v1223 = vpop.f32.mrf.mxu0
  %1224 = vmatprep.mubr.f32.mxu0 0.0
  %1225 = vmatmul.mubr.f32.gmra.mxu0 %v1089
  %v1226 = vpop.f32.mrf.mxu0
  %v1227 = vadd.f32 %v1049, %v1226
  %v1228 = vpop.f32.mrf.mxu0
  %1229 = vmatprep.mubr.f32.mxu0 0.0
  %1230 = vmatmul.mubr.f32.gmra.mxu0 %v1092
  %v1231 = vpop.f32.mrf.mxu0
  %v1232 = vadd.f32 %v1049, %v1231
  %v1233 = vpop.f32.mrf.mxu0
  %1234 = vmatprep.mubr.f32.mxu0 0.0
  %1235 = vmatmul.mubr.f32.gmra.mxu0 %v1095
  %v1236 = vpop.f32.mrf.mxu0
  %v1237 = vadd.f32 %v1049, %v1236
  %v1238 = vpop.f32.mrf.mxu0
  %1239 = vmatprep.mubr.f32.mxu0 0.0
  %1240 = vmatmul.mubr.f32.gmra.mxu0 %v1098
  %v1241 = vpop.f32.mrf.mxu0
  %v1242 = vadd.f32 %v1049, %v1241
  %v1243 = vpop.f32.mrf.mxu0
  %1244 = vdwg.mxu0
  %1261 = vrot.lane.b32.xlu0 %v1167, 1
  %v1262 = vpop.permute.xlu0 %1261
  %1263 = vrot.lane.b32.xlu0 %v1172, 1
  %v1264 = vpop.permute.xlu0 %1263
  %1265 = vrot.lane.b32.xlu0 %v1177, 1
  %v1266 = vpop.permute.xlu0 %1265
  %1267 = vrot.lane.b32.xlu0 %v1182, 1
  %v1268 = vpop.permute.xlu0 %1267
  %1269 = vrot.lane.b32.xlu0 %v1187, 1
  %v1270 = vpop.permute.xlu0 %1269
  %1271 = vrot.lane.b32.xlu0 %v1192, 1
  %v1272 = vpop.permute.xlu0 %1271
  %1273 = vrot.lane.b32.xlu0 %v1197, 1
  %v1274 = vpop.permute.xlu0 %1273
  %1275 = vrot.lane.b32.xlu0 %v1202, 1
  %v1276 = vpop.permute.xlu0 %1275
  %1277 = vrot.lane.b32.xlu0 %v1207, 1
  %v1278 = vpop.permute.xlu0 %1277
  %1279 = vrot.lane.b32.xlu0 %v1212, 1
  %v1280 = vpop.permute.xlu0 %1279
  %1281 = vrot.lane.b32.xlu0 %v1217, 1
  %v1282 = vpop.permute.xlu0 %1281
  %1283 = vrot.lane.b32.xlu0 %v1222, 1
  %v1284 = vpop.permute.xlu0 %1283
  %1285 = vrot.lane.b32.xlu0 %v1227, 1
  %v1286 = vpop.permute.xlu0 %1285
  %1287 = vrot.lane.b32.xlu0 %v1232, 1
  %v1288 = vpop.permute.xlu0 %1287
  %1289 = vrot.lane.b32.xlu0 %v1237, 1
  %v1290 = vpop.permute.xlu0 %1289
  %1291 = vrot.lane.b32.xlu0 %v1242, 1
  %v1292 = vpop.permute.xlu0 %1291
  %v1309 = vsub.f32 %v1167, %v1262
  %v1310 = vsub.f32 %v1172, %v1264
  %v1311 = vsub.f32 %v1177, %v1266
  %v1312 = vsub.f32 %v1182, %v1268
  %v1313 = vsub.f32 %v1187, %v1270
  %v1314 = vsub.f32 %v1192, %v1272
  %v1315 = vsub.f32 %v1197, %v1274
  %v1316 = vsub.f32 %v1202, %v1276
  %v1317 = vsub.f32 %v1207, %v1278
  %v1318 = vsub.f32 %v1212, %v1280
  %v1319 = vsub.f32 %v1217, %v1282
  %v1320 = vsub.f32 %v1222, %v1284
  %v1321 = vsub.f32 %v1227, %v1286
  %v1322 = vsub.f32 %v1232, %v1288
  %v1323 = vsub.f32 %v1237, %v1290
  %v1324 = vsub.f32 %v1242, %v1292
  %v1325 = vsub.f32 0.0, %v1309
  %v1326 = vsub.f32 0.0, %v1310
  %v1327 = vsub.f32 0.0, %v1311
  %v1328 = vsub.f32 0.0, %v1312
  %v1329 = vsub.f32 0.0, %v1313
  %v1330 = vsub.f32 0.0, %v1314
  %v1331 = vsub.f32 0.0, %v1315
  %v1332 = vsub.f32 0.0, %v1316
  %v1333 = vsub.f32 0.0, %v1317
  %v1334 = vsub.f32 0.0, %v1318
  %v1335 = vsub.f32 0.0, %v1319
  %v1336 = vsub.f32 0.0, %v1320
  %v1337 = vsub.f32 0.0, %v1321
  %v1338 = vsub.f32 0.0, %v1322
  %v1339 = vsub.f32 0.0, %v1323
  %v1340 = vsub.f32 0.0, %v1324
  %v1341 = vmul.f32 %v1325, 1.442695
  %v1342 = vpow.pop %v1341
  %v1343 = vmul.f32 %v1326, 1.442695
  %v1344 = vpow.pop %v1343
  %v1345 = vmul.f32 %v1327, 1.442695
  %v1346 = vpow.pop %v1345
  %v1347 = vmul.f32 %v1328, 1.442695
  %v1348 = vpow.pop %v1347
  %v1349 = vmul.f32 %v1329, 1.442695
  %v1350 = vpow.pop %v1349
  %v1351 = vmul.f32 %v1330, 1.442695
  %v1352 = vpow.pop %v1351
  %v1353 = vmul.f32 %v1331, 1.442695
  %v1354 = vpow.pop %v1353
  %v1355 = vmul.f32 %v1332, 1.442695
  %v1356 = vpow.pop %v1355
  %v1357 = vmul.f32 %v1333, 1.442695
  %v1358 = vpow.pop %v1357
  %v1359 = vmul.f32 %v1334, 1.442695
  %v1360 = vpow.pop %v1359
  %v1361 = vmul.f32 %v1335, 1.442695
  %v1362 = vpow.pop %v1361
  %v1363 = vmul.f32 %v1336, 1.442695
  %v1364 = vpow.pop %v1363
  %v1365 = vmul.f32 %v1337, 1.442695
  %v1366 = vpow.pop %v1365
  %v1367 = vmul.f32 %v1338, 1.442695
  %v1368 = vpow.pop %v1367
  %v1369 = vmul.f32 %v1339, 1.442695
  %v1370 = vpow.pop %v1369
  %v1371 = vmul.f32 %v1340, 1.442695
  %v1372 = vpow.pop %v1371
  %v1373 = vadd.f32 %v1342, 1.0
  %v1374 = vadd.f32 %v1344, 1.0
  %v1375 = vadd.f32 %v1346, 1.0
  %v1376 = vadd.f32 %v1348, 1.0
  %v1377 = vadd.f32 %v1350, 1.0
  %v1378 = vadd.f32 %v1352, 1.0
  %v1379 = vadd.f32 %v1354, 1.0
  %v1380 = vadd.f32 %v1356, 1.0
  %v1381 = vadd.f32 %v1358, 1.0
  %v1382 = vadd.f32 %v1360, 1.0
  %v1383 = vadd.f32 %v1362, 1.0
  %v1384 = vadd.f32 %v1364, 1.0
  %v1385 = vadd.f32 %v1366, 1.0
  %v1386 = vadd.f32 %v1368, 1.0
  %v1387 = vadd.f32 %v1370, 1.0
  %v1388 = vadd.f32 %v1372, 1.0
  %v1389 = vrcp.pop %v1373
  %v1390 = vmul.f32 1.0, %v1389
  %v1391 = vrcp.pop %v1374
  %v1392 = vmul.f32 1.0, %v1391
  %v1393 = vrcp.pop %v1375
  %v1394 = vmul.f32 1.0, %v1393
  %v1395 = vrcp.pop %v1376
  %v1396 = vmul.f32 1.0, %v1395
  %v1397 = vrcp.pop %v1377
  %v1398 = vmul.f32 1.0, %v1397
  %v1399 = vrcp.pop %v1378
  %v1400 = vmul.f32 1.0, %v1399
  %v1401 = vrcp.pop %v1379
  %v1402 = vmul.f32 1.0, %v1401
  %v1403 = vrcp.pop %v1380
  %v1404 = vmul.f32 1.0, %v1403
  %v1405 = vrcp.pop %v1381
  %v1406 = vmul.f32 1.0, %v1405
  %v1407 = vrcp.pop %v1382
  %v1408 = vmul.f32 1.0, %v1407
  %v1409 = vrcp.pop %v1383
  %v1410 = vmul.f32 1.0, %v1409
  %v1411 = vrcp.pop %v1384
  %v1412 = vmul.f32 1.0, %v1411
  %v1413 = vrcp.pop %v1385
  %v1414 = vmul.f32 1.0, %v1413
  %v1415 = vrcp.pop %v1386
  %v1416 = vmul.f32 1.0, %v1415
  %v1417 = vrcp.pop %v1387
  %v1418 = vmul.f32 1.0, %v1417
  %v1419 = vrcp.pop %v1388
  %v1420 = vmul.f32 1.0, %v1419
  %v1421 = vmul.f32 %v1309, 1.442695
  %v1422 = vpow.pop %v1421
  %v1423 = vmul.f32 %v1310, 1.442695
  %v1424 = vpow.pop %v1423
  %v1425 = vmul.f32 %v1311, 1.442695
  %v1426 = vpow.pop %v1425
  %v1427 = vmul.f32 %v1312, 1.442695
  %v1428 = vpow.pop %v1427
  %v1429 = vmul.f32 %v1313, 1.442695
  %v1430 = vpow.pop %v1429
  %v1431 = vmul.f32 %v1314, 1.442695
  %v1432 = vpow.pop %v1431
  %v1433 = vmul.f32 %v1315, 1.442695
  %v1434 = vpow.pop %v1433
  %v1435 = vmul.f32 %v1316, 1.442695
  %v1436 = vpow.pop %v1435
  %v1437 = vmul.f32 %v1317, 1.442695
  %v1438 = vpow.pop %v1437
  %v1439 = vmul.f32 %v1318, 1.442695
  %v1440 = vpow.pop %v1439
  %v1441 = vmul.f32 %v1319, 1.442695
  %v1442 = vpow.pop %v1441
  %v1443 = vmul.f32 %v1320, 1.442695
  %v1444 = vpow.pop %v1443
  %v1445 = vmul.f32 %v1321, 1.442695
  %v1446 = vpow.pop %v1445
  %v1447 = vmul.f32 %v1322, 1.442695
  %v1448 = vpow.pop %v1447
  %v1449 = vmul.f32 %v1323, 1.442695
  %v1450 = vpow.pop %v1449
  %v1451 = vmul.f32 %v1324, 1.442695
  %v1452 = vpow.pop %v1451
  %v1453 = vadd.f32 %v1422, 1.0
  %v1454 = vadd.f32 %v1424, 1.0
  %v1455 = vadd.f32 %v1426, 1.0
  %v1456 = vadd.f32 %v1428, 1.0
  %v1457 = vadd.f32 %v1430, 1.0
  %v1458 = vadd.f32 %v1432, 1.0
  %v1459 = vadd.f32 %v1434, 1.0
  %v1460 = vadd.f32 %v1436, 1.0
  %v1461 = vadd.f32 %v1438, 1.0
  %v1462 = vadd.f32 %v1440, 1.0
  %v1463 = vadd.f32 %v1442, 1.0
  %v1464 = vadd.f32 %v1444, 1.0
  %v1465 = vadd.f32 %v1446, 1.0
  %v1466 = vadd.f32 %v1448, 1.0
  %v1467 = vadd.f32 %v1450, 1.0
  %v1468 = vadd.f32 %v1452, 1.0
  %v1469 = vrcp.pop %v1453
  %v1470 = vmul.f32 1.0, %v1469
  %v1471 = vrcp.pop %v1454
  %v1472 = vmul.f32 1.0, %v1471
  %v1473 = vrcp.pop %v1455
  %v1474 = vmul.f32 1.0, %v1473
  %v1475 = vrcp.pop %v1456
  %v1476 = vmul.f32 1.0, %v1475
  %v1477 = vrcp.pop %v1457
  %v1478 = vmul.f32 1.0, %v1477
  %v1479 = vrcp.pop %v1458
  %v1480 = vmul.f32 1.0, %v1479
  %v1481 = vrcp.pop %v1459
  %v1482 = vmul.f32 1.0, %v1481
  %v1483 = vrcp.pop %v1460
  %v1484 = vmul.f32 1.0, %v1483
  %v1485 = vrcp.pop %v1461
  %v1486 = vmul.f32 1.0, %v1485
  %v1487 = vrcp.pop %v1462
  %v1488 = vmul.f32 1.0, %v1487
  %v1489 = vrcp.pop %v1463
  %v1490 = vmul.f32 1.0, %v1489
  %v1491 = vrcp.pop %v1464
  %v1492 = vmul.f32 1.0, %v1491
  %v1493 = vrcp.pop %v1465
  %v1494 = vmul.f32 1.0, %v1493
  %v1495 = vrcp.pop %v1466
  %v1496 = vmul.f32 1.0, %v1495
  %v1497 = vrcp.pop %v1467
  %v1498 = vmul.f32 1.0, %v1497
  %v1499 = vrcp.pop %v1468
  %v1500 = vmul.f32 1.0, %v1499
  %1517 = vrot.lane.b32.xlu0 %v1470, 127
  %v1518 = vpop.permute.xlu0 %1517
  %1519 = vrot.lane.b32.xlu0 %v1472, 127
  %v1520 = vpop.permute.xlu0 %1519
  %1521 = vrot.lane.b32.xlu0 %v1474, 127
  %v1522 = vpop.permute.xlu0 %1521
  %1523 = vrot.lane.b32.xlu0 %v1476, 127
  %v1524 = vpop.permute.xlu0 %1523
  %1525 = vrot.lane.b32.xlu0 %v1478, 127
  %v1526 = vpop.permute.xlu0 %1525
  %1527 = vrot.lane.b32.xlu0 %v1480, 127
  %v1528 = vpop.permute.xlu0 %1527
  %1529 = vrot.lane.b32.xlu0 %v1482, 127
  %v1530 = vpop.permute.xlu0 %1529
  %1531 = vrot.lane.b32.xlu0 %v1484, 127
  %v1532 = vpop.permute.xlu0 %1531
  %1533 = vrot.lane.b32.xlu0 %v1486, 127
  %v1534 = vpop.permute.xlu0 %1533
  %1535 = vrot.lane.b32.xlu0 %v1488, 127
  %v1536 = vpop.permute.xlu0 %1535
  %1537 = vrot.lane.b32.xlu0 %v1490, 127
  %v1538 = vpop.permute.xlu0 %1537
  %1539 = vrot.lane.b32.xlu0 %v1492, 127
  %v1540 = vpop.permute.xlu0 %1539
  %1541 = vrot.lane.b32.xlu0 %v1494, 127
  %v1542 = vpop.permute.xlu0 %1541
  %1543 = vrot.lane.b32.xlu0 %v1496, 127
  %v1544 = vpop.permute.xlu0 %1543
  %1545 = vrot.lane.b32.xlu0 %v1498, 127
  %v1546 = vpop.permute.xlu0 %1545
  %1547 = vrot.lane.b32.xlu0 %v1500, 127
  %v1548 = vpop.permute.xlu0 %1547
  %vm1565 = vcmask 7168
  %v1566 = vsel %vm1565, %v1518, %v1390
  %v1567 = vsel %vm1565, %v1520, %v1392
  %v1568 = vsel %vm1565, %v1522, %v1394
  %v1569 = vsel %vm1565, %v1524, %v1396
  %v1570 = vsel %vm1565, %v1526, %v1398
  %v1571 = vsel %vm1565, %v1528, %v1400
  %v1572 = vsel %vm1565, %v1530, %v1402
  %v1573 = vsel %vm1565, %v1532, %v1404
  %v1574 = vsel %vm1565, %v1534, %v1406
  %v1575 = vsel %vm1565, %v1536, %v1408
  %v1576 = vsel %vm1565, %v1538, %v1410
  %v1577 = vsel %vm1565, %v1540, %v1412
  %v1578 = vsel %vm1565, %v1542, %v1414
  %v1579 = vsel %vm1565, %v1544, %v1416
  %v1580 = vsel %vm1565, %v1546, %v1418
  %v1581 = vsel %vm1565, %v1548, %v1420
  %1582 = vst.msk [vmem:[%s11] sm:$0xff] %vm361, %v1566
  %1583 = vst.msk [vmem:[%s11 + $0x8] sm:$0xff] %vm361, %v1567
  %1584 = vst.msk [vmem:[%s11 + $0x10] sm:$0xff] %vm361, %v1568
  %1585 = vst.msk [vmem:[%s11 + $0x18] sm:$0xff] %vm361, %v1569
  %1586 = vst.msk [vmem:[%s11 + $0x20] sm:$0xff] %vm361, %v1570
  %1587 = vst.msk [vmem:[%s11 + $0x28] sm:$0xff] %vm361, %v1571
  %1588 = vst.msk [vmem:[%s11 + $0x30] sm:$0xff] %vm361, %v1572
  %1589 = vst.msk [vmem:[%s11 + $0x38] sm:$0xff] %vm361, %v1573
  %1590 = vst.msk [vmem:[%s11 + $0x40] sm:$0xff] %vm361, %v1574
  %1591 = vst.msk [vmem:[%s11 + $0x48] sm:$0xff] %vm361, %v1575
  %1592 = vst.msk [vmem:[%s11 + $0x50] sm:$0xff] %vm361, %v1576
  %1593 = vst.msk [vmem:[%s11 + $0x58] sm:$0xff] %vm361, %v1577
  %1594 = vst.msk [vmem:[%s11 + $0x60] sm:$0xff] %vm361, %v1578
  %1595 = vst.msk [vmem:[%s11 + $0x68] sm:$0xff] %vm361, %v1579
  %1596 = vst.msk [vmem:[%s11 + $0x70] sm:$0xff] %vm361, %v1580
  %1597 = vst.msk [vmem:[%s11 + $0x78] sm:$0xff] %vm361, %v1581
  // Predicated region
  $region46: #{tpu_custom_call.1} parent=0 // pred_check
    _
  $region47: #{tpu_custom_call.1} parent=0 // pred_check_branch
    %1599 = sbr.rel (0) target = $region49
  $region48: #{tpu_custom_call.1} parent=0 // pred_region
    _
  $region49: #{tpu_custom_call.1} parent=0 // pred_fallthru
    _
  // Predicated region
  $region50: #{tpu_custom_call.1} parent=0 // pred_check
    _
  $region51: #{tpu_custom_call.1} parent=0 // pred_check_branch
    %1601 = sbr.rel (0) target = $region53
  $region52: #{tpu_custom_call.1} parent=0 // pred_region
    _
  $region53: #{tpu_custom_call.1} parent=0 // pred_fallthru
    _

</llo_original>
